<compile_context>
chip_gen: v7x
topology: tpu7x:2x2x1
jax: 0.10.0
libtpu: 0.0.40
codegen_flags: <defaults>
</compile_context>

<pallas_src>
import functools

import jax
import jax.numpy as jnp
from jax.experimental import pallas as pl
from jax.experimental.pallas import tpu as pltpu

EPS = 1e-5


def _round_up(x, m):
    return (x + m - 1) // m * m


def _conv_stats_kernel(planes_ref, w_ref, mask_ref, y_ref, stats_ref, *, owp, lwin):
    """Per-image fused conv (9 tap matmuls) + per-image BN partial statistics.

    planes_ref: (4, 1, Cin_p, Lp)   phase-decimated, flattened, zero-padded input
    w_ref:      (9, Cout, Cin_p)    per-tap weight matrices
    mask_ref:   (1, Lwin)  f32      1.0 on valid output pixels, 0.0 on junk lanes
    y_ref:      (1, Cout, Lwin) f32 raw (pre-BN) conv output, pixels on lanes
    stats_ref:  (1, Cout, 2)  f32   per-image [sum, sum_of_squares] per channel
    """
    cout = y_ref.shape[1]
    acc = jnp.zeros((cout, lwin), jnp.float32)
    # 3x3 taps: tap (dh, dw) reads phase plane (dh%2, dw%2) at a static flat offset.
    for dh in range(3):
        for dw in range(3):
            t = dh * 3 + dw
            phase = (dh % 2) * 2 + (dw % 2)
            start = (dh // 2) * owp + (dw // 2)                 # static offset
            rhs = planes_ref[phase, 0, :, start:start + lwin]   # (Cin_p, Lwin)
            acc = acc + jnp.dot(w_ref[t], rhs, preferred_element_type=jnp.float32)
    y_ref[...] = acc[None]

    # One-pass partial BN statistics (junk lanes masked out), f32 accumulators.
    av = acc * mask_ref[...]
    s1 = jnp.sum(av, axis=1, keepdims=True)            # (Cout, 1)
    s2 = jnp.sum(av * av, axis=1, keepdims=True)       # (Cout, 1)
    stats_ref[...] = jnp.concatenate([s1, s2], axis=1)[None]


def _bn_act_kernel(y_ref, scale_ref, bias_ref, out_ref):
    """Normalize + ReLU: a single FMA + max per element (scale/bias pre-folded)."""
    out_ref[...] = jnp.maximum(y_ref[...] * scale_ref[...] + bias_ref[...], 0.0)


@functools.partial(jax.jit, static_argnames=("stride", "compute_dtype"))
def conv_pool_forward(x_nchw, weight, gamma, beta, *, stride=2,
                      compute_dtype=jnp.bfloat16):
    """ConvPool forward.

    x_nchw: (N, Cin, H, W); weight: (Cout, Cin, 3, 3); gamma/beta: (Cout,).
    Returns (N, Cout, OH, OW) float32 in NCHW.  BatchNorm uses batch statistics
    (train mode, as a freshly constructed module would); activation = ReLU.
    """
    n, cin, h, w = x_nchw.shape
    cout, _, kh, kw = weight.shape
    assert (kh, kw) == (3, 3) and stride == 2, "specialized to k=3, s=2"

    # ZeroPad2d((1, 0, 1, 0)): pad left/top by one (stay in NCHW).
    x_pad = jnp.pad(x_nchw, ((0, 0), (0, 0), (1, 0), (1, 0)))
    hp, wp = h + 1, w + 1
    oh = (hp - kh) // stride + 1
    ow = (wp - kw) // stride + 1
    ohp, owp = oh + 1, ow + 1              # phase-plane extent (+1 row/col halo)

    l_valid = oh * owp                     # flat window covering all output rows
    lwin = _round_up(l_valid, 128)         # lane-dense compute / output width
    lp = _round_up(owp + 1 + lwin, 128)    # flat plane length (covers max tap offset)
    cin_p = _round_up(cin, 8)

    # --- glue: stride-2 phase decomposition of the padded input (~1x input bytes).
    # plane[p*2+q][n, c, i, j] = x_pad[n, c, 2i+p, 2j+q]
    phase_list = []
    for p in range(2):
        for q in range(2):
            sub = x_pad[:, :, p::2, q::2][:, :, :ohp, :owp]
            ph = jnp.zeros((n, cin, ohp, owp), x_pad.dtype)
            ph = ph.at[:, :, :sub.shape[2], :sub.shape[3]].set(sub)
            phase_list.append(ph.reshape(n, cin, ohp * owp))
    planes = jnp.stack(phase_list, axis=0)                       # (4, N, Cin, ohp*owp)
    planes = jnp.pad(planes, ((0, 0), (0, 0), (0, cin_p - cin),
                              (0, lp - ohp * owp))).astype(compute_dtype)

    # Per-tap weight matrices: w_taps[dh*3+dw] = weight[:, :, dh, dw] -> (Cout, Cin_p)
    w_taps = jnp.transpose(weight, (2, 3, 0, 1)).reshape(kh * kw, cout, cin)
    w_taps = jnp.pad(w_taps, ((0, 0), (0, 0), (0, cin_p - cin))).astype(compute_dtype)

    # Valid-pixel mask over the flat lane window (per-row junk column + tail).
    j = jnp.arange(lwin)
    mask = ((j < l_valid) & (j % owp < ow)).astype(jnp.float32).reshape(1, lwin)

    itemsize = jnp.dtype(compute_dtype).itemsize
    cparams = pltpu.CompilerParams(
        dimension_semantics=("parallel",),      # images are independent -> megacore
        vmem_limit_bytes=32 * 1024 * 1024)

    cost1 = pl.CostEstimate(
        flops=2 * n * kh * kw * cout * cin_p * lwin,
        transcendentals=0,
        bytes_accessed=(planes.size * itemsize + w_taps.size * itemsize
                        + mask.size * 4 + n * cout * lwin * 4 + n * cout * 2 * 4))

    # --- pass 1: conv (9 accumulating MXU matmuls) + per-image BN partial stats.
    y_raw, stats = pl.pallas_call(
        functools.partial(_conv_stats_kernel, owp=owp, lwin=lwin),
        out_shape=(jax.ShapeDtypeStruct((n, cout, lwin), jnp.float32),
                   jax.ShapeDtypeStruct((n, cout, 2), jnp.float32)),
        grid=(n,),
        in_specs=[
            pl.BlockSpec((4, 1, cin_p, lp), lambda i: (0, i, 0, 0)),
            pl.BlockSpec((kh * kw, cout, cin_p), lambda i: (0, 0, 0)),
            pl.BlockSpec((1, lwin), lambda i: (0, 0)),
        ],
        out_specs=(
            pl.BlockSpec((1, cout, lwin), lambda i: (i, 0, 0)),
            pl.BlockSpec((1, cout, 2), lambda i: (i, 0, 0)),
        ),
        compiler_params=cparams,
        cost_estimate=cost1,
    )(planes, w_taps, mask)

    # --- glue: global BN statistics (O(Cout) work) and folded scale/bias.
    count = float(n * oh * ow)
    total = jnp.sum(stats, axis=0)                               # (Cout, 2)
    mean = total[:, 0] / count
    var = jnp.maximum(total[:, 1] / count - mean * mean, 0.0)    # biased variance
    scale = gamma.astype(jnp.float32) * jax.lax.rsqrt(var + EPS)
    bias = beta.astype(jnp.float32) - mean * scale
    scale3 = scale.reshape(1, cout, 1)
    bias3 = bias.reshape(1, cout, 1)

    cost2 = pl.CostEstimate(
        flops=3 * n * cout * lwin, transcendentals=0,
        bytes_accessed=2 * n * cout * lwin * 4 + 2 * cout * 4)

    # --- pass 2: y*scale + bias, ReLU; in place via input/output aliasing.
    y_act = pl.pallas_call(
        _bn_act_kernel,
        out_shape=jax.ShapeDtypeStruct((n, cout, lwin), jnp.float32),
        grid=(n,),
        in_specs=[
            pl.BlockSpec((1, cout, lwin), lambda i: (i, 0, 0)),
            pl.BlockSpec((1, cout, 1), lambda i: (0, 0, 0)),
            pl.BlockSpec((1, cout, 1), lambda i: (0, 0, 0)),
        ],
        out_specs=pl.BlockSpec((1, cout, lwin), lambda i: (i, 0, 0)),
        input_output_aliases={0: 0},
        compiler_params=cparams,
        cost_estimate=cost2,
    )(y_raw, scale3, bias3)

    # --- glue: drop junk lanes; result is already NCHW.
    out = y_act[:, :, :oh * owp].reshape(n, cout, oh, owp)[:, :, :, :ow]
    return out


def _reference(x_nchw, weight, gamma, beta, stride=2):
    """Pure-JAX reference matching PyTorch ConvPool.forward (train-mode BN, ReLU)."""
    x_pad = jnp.pad(x_nchw, ((0, 0), (0, 0), (1, 0), (1, 0)))
    y = jax.lax.conv_general_dilated(
        x_pad, weight, window_strides=(stride, stride), padding="VALID",
        dimension_numbers=("NCHW", "OIHW", "NCHW"))
    mean = jnp.mean(y, axis=(0, 2, 3), keepdims=True)
    var = jnp.mean((y - mean) ** 2, axis=(0, 2, 3), keepdims=True)
    y = (y - mean) * jax.lax.rsqrt(var + EPS)
    y = y * gamma.reshape(1, -1, 1, 1) + beta.reshape(1, -1, 1, 1)
    return jnp.maximum(y, 0.0)


if __name__ == "__main__":
    key = jax.random.PRNGKey(0)
    kx, kw_key = jax.random.split(key)

    N, Cin, H, W = 2, 4, 16, 16
    Cout, K = 8, 3

    x = jax.random.normal(kx, (N, Cin, H, W), dtype=jnp.float32)
    fan_in = Cin * K * K
    bound = (1.0 / fan_in) ** 0.5
    weight = jax.random.uniform(kw_key, (Cout, Cin, K, K), jnp.float32, -bound, bound)
    gamma = jnp.ones((Cout,), jnp.float32)   # BatchNorm2d default weight
    beta = jnp.zeros((Cout,), jnp.float32)   # BatchNorm2d default bias

    # float32 path: exact check against the pure-JAX reference.
    out_f32 = jax.block_until_ready(
        conv_pool_forward(x, weight, gamma, beta, compute_dtype=jnp.float32))
    ref = jax.block_until_ready(_reference(x, weight, gamma, beta))
    assert out_f32.shape == (N, Cout, 8, 8), out_f32.shape
    assert jnp.allclose(out_f32, ref, atol=5e-4, rtol=5e-4), \
        float(jnp.max(jnp.abs(out_f32 - ref)))

    # bf16 MXU path (default): compare against the reference evaluated on
    # bf16-rounded operands (identical products, f32 accumulation in both).
    out_bf16 = jax.block_until_ready(conv_pool_forward(x, weight, gamma, beta))
    x_r = x.astype(jnp.bfloat16).astype(jnp.float32)
    w_r = weight.astype(jnp.bfloat16).astype(jnp.float32)
    ref_b = jax.block_until_ready(_reference(x_r, w_r, gamma, beta))
    assert out_bf16.shape == (N, Cout, 8, 8), out_bf16.shape
    assert jnp.allclose(out_bf16, ref_b, atol=5e-3, rtol=5e-3), \
        float(jnp.max(jnp.abs(out_bf16 - ref_b)))

    print("KERNEL_OK")
</pallas_src>

<mosaic_0001>
module attributes {stable_mosaic.version = 11 : i64} {
  func.func @_bn_act_kernel(%arg0: i32, %arg1: memref<1x8x128xf32, #tpu.memory_space<vmem>>, %arg2: memref<1x8x1xf32, #tpu.memory_space<vmem>>, %arg3: memref<1x8x1xf32, #tpu.memory_space<vmem>>, %arg4: memref<1x8x128xf32, #tpu.memory_space<vmem>>) attributes {dimension_semantics = [#tpu.dimension_semantics<parallel>], iteration_bounds = array<i64: 2>, scalar_prefetch = 0 : i64, scratch_operands = 0 : i64, tpu.core_type = #tpu.core_type<tc>, window_params = [{transform_indices = @transform_0, window_bounds = array<i64: 1, 8, 128>}, {pipeline_mode = #tpu.pipeline_mode<synchronous>, transform_indices = @transform_1, window_bounds = array<i64: 1, 8, 1>}, {pipeline_mode = #tpu.pipeline_mode<synchronous>, transform_indices = @transform_2, window_bounds = array<i64: 1, 8, 1>}, {transform_indices = @transform_3, window_bounds = array<i64: 1, 8, 128>}]} {
    %c0 = arith.constant 0 : index
    %c0_0 = arith.constant 0 : index
    %c0_1 = arith.constant 0 : index
    %0 = vector.load %arg1[%c0, %c0_0, %c0_1] : memref<1x8x128xf32, #tpu.memory_space<vmem>>, vector<1x8x128xf32>
    %c0_2 = arith.constant 0 : index
    %c0_3 = arith.constant 0 : index
    %c0_4 = arith.constant 0 : index
    %1 = vector.load %arg2[%c0_2, %c0_3, %c0_4] : memref<1x8x1xf32, #tpu.memory_space<vmem>>, vector<1x8x1xf32>
    %2 = vector.broadcast %1 : vector<1x8x1xf32> to vector<1x8x128xf32>
    %3 = arith.mulf %0, %2 : vector<1x8x128xf32>
    %c0_5 = arith.constant 0 : index
    %c0_6 = arith.constant 0 : index
    %c0_7 = arith.constant 0 : index
    %4 = vector.load %arg3[%c0_5, %c0_6, %c0_7] : memref<1x8x1xf32, #tpu.memory_space<vmem>>, vector<1x8x1xf32>
    %5 = vector.broadcast %4 : vector<1x8x1xf32> to vector<1x8x128xf32>
    %6 = arith.addf %3, %5 : vector<1x8x128xf32>
    %cst = arith.constant 0.000000e+00 : f32
    %7 = vector.broadcast %cst : f32 to vector<1x8x128xf32>
    %8 = arith.maximumf %6, %7 : vector<1x8x128xf32>
    %c0_8 = arith.constant 0 : index
    %c0_9 = arith.constant 0 : index
    %c0_10 = arith.constant 0 : index
    %9 = vector.load %arg4[%c0_8, %c0_9, %c0_10] : memref<1x8x128xf32, #tpu.memory_space<vmem>>, vector<1x8x128xf32>
    tpu.vector_store %arg4[%c0_8, %c0_9, %c0_10], %8 {strides = array<i32>} : memref<1x8x128xf32, #tpu.memory_space<vmem>>, vector<1x8x128xf32>,
    return
  }
  func.func @transform_0(%arg0: i32) -> (i32, i32, i32) {
    %c0_i32 = arith.constant 0 : i32
    %c0_i32_0 = arith.constant 0 : i32
    %c0_i32_1 = arith.constant 0 : i32
    return %arg0, %c0_i32, %c0_i32_0 : i32, i32, i32
  }
  func.func @transform_1(%arg0: i32) -> (i32, i32, i32) {
    %c0_i32 = arith.constant 0 : i32
    %c0_i32_0 = arith.constant 0 : i32
    %c0_i32_1 = arith.constant 0 : i32
    %c0_i32_2 = arith.constant 0 : i32
    return %c0_i32, %c0_i32_0, %c0_i32_1 : i32, i32, i32
  }
  func.func @transform_2(%arg0: i32) -> (i32, i32, i32) {
    %c0_i32 = arith.constant 0 : i32
    %c0_i32_0 = arith.constant 0 : i32
    %c0_i32_1 = arith.constant 0 : i32
    %c0_i32_2 = arith.constant 0 : i32
    return %c0_i32, %c0_i32_0, %c0_i32_1 : i32, i32, i32
  }
  func.func @transform_3(%arg0: i32) -> (i32, i32, i32) {
    %c0_i32 = arith.constant 0 : i32
    %c0_i32_0 = arith.constant 0 : i32
    %c0_i32_1 = arith.constant 0 : i32
    return %arg0, %c0_i32, %c0_i32_0 : i32, i32, i32
  }
}

module attributes {stable_mosaic.version = 11 : i64} {
  func.func @_conv_stats_kernel(%arg0: i32, %arg1: memref<4x1x8x256xf32, #tpu.memory_space<vmem>>, %arg2: memref<9x8x8xf32, #tpu.memory_space<vmem>>, %arg3: memref<1x128xf32, #tpu.memory_space<vmem>>, %arg4: memref<1x8x128xf32, #tpu.memory_space<vmem>>, %arg5: memref<1x8x2xf32, #tpu.memory_space<vmem>>) attributes {dimension_semantics = [#tpu.dimension_semantics<parallel>], iteration_bounds = array<i64: 2>, scalar_prefetch = 0 : i64, scratch_operands = 0 : i64, tpu.core_type = #tpu.core_type<tc>, window_params = [{transform_indices = @transform_0, window_bounds = array<i64: 4, 1, 8, 256>}, {pipeline_mode = #tpu.pipeline_mode<synchronous>, transform_indices = @transform_1, window_bounds = array<i64: 9, 8, 8>}, {pipeline_mode = #tpu.pipeline_mode<synchronous>, transform_indices = @transform_2, window_bounds = array<i64: 1, 128>}, {transform_indices = @transform_3, window_bounds = array<i64: 1, 8, 128>}, {transform_indices = @transform_4, window_bounds = array<i64: 1, 8, 2>}]} {
    %cst = arith.constant 0.000000e+00 : f32
    %0 = vector.broadcast %cst : f32 to vector<8x128xf32>
    %c0 = arith.constant 0 : index
    %c0_0 = arith.constant 0 : index
    %c0_1 = arith.constant 0 : index
    %c0_2 = arith.constant 0 : index
    %1 = vector.load %arg1[%c0, %c0_0, %c0_1, %c0_2] : memref<4x1x8x256xf32, #tpu.memory_space<vmem>>, vector<1x1x8x128xf32>
    %2 = vector.shape_cast %1 : vector<1x1x8x128xf32> to vector<8x128xf32>
    %c0_3 = arith.constant 0 : index
    %c0_4 = arith.constant 0 : index
    %c0_5 = arith.constant 0 : index
    %3 = vector.load %arg2[%c0_3, %c0_4, %c0_5] : memref<9x8x8xf32, #tpu.memory_space<vmem>>, vector<1x8x8xf32>
    %4 = vector.shape_cast %3 : vector<1x8x8xf32> to vector<8x8xf32>
    %cst_6 = arith.constant dense<0.000000e+00> : vector<8x128xf32>
    %5 = tpu.matmul %4, %2, %cst_6 {dimension_numbers = #tpu.dot_dimension_numbers<[1], [0], [0], [1], [0, 0, 1, 1], [], []>} : vector<8x8xf32>, vector<8x128xf32>, vector<8x128xf32> -> vector<8x128xf32>
    %6 = arith.addf %0, %5 : vector<8x128xf32>
    %c1 = arith.constant 1 : index
    %c0_7 = arith.constant 0 : index
    %c0_8 = arith.constant 0 : index
    %c0_9 = arith.constant 0 : index
    %7 = vector.load %arg1[%c1, %c0_7, %c0_8, %c0_9] : memref<4x1x8x256xf32, #tpu.memory_space<vmem>>, vector<1x1x8x128xf32>
    %8 = vector.shape_cast %7 : vector<1x1x8x128xf32> to vector<8x128xf32>
    %c1_10 = arith.constant 1 : index
    %c0_11 = arith.constant 0 : index
    %c0_12 = arith.constant 0 : index
    %9 = vector.load %arg2[%c1_10, %c0_11, %c0_12] : memref<9x8x8xf32, #tpu.memory_space<vmem>>, vector<1x8x8xf32>
    %10 = vector.shape_cast %9 : vector<1x8x8xf32> to vector<8x8xf32>
    %cst_13 = arith.constant dense<0.000000e+00> : vector<8x128xf32>
    %11 = tpu.matmul %10, %8, %cst_13 {dimension_numbers = #tpu.dot_dimension_numbers<[1], [0], [0], [1], [0, 0, 1, 1], [], []>} : vector<8x8xf32>, vector<8x128xf32>, vector<8x128xf32> -> vector<8x128xf32>
    %12 = arith.addf %6, %11 : vector<8x128xf32>
    %c0_14 = arith.constant 0 : index
    %c0_15 = arith.constant 0 : index
    %c0_16 = arith.constant 0 : index
    %c1_17 = arith.constant 1 : index
    %13 = vector.load %arg1[%c0_14, %c0_15, %c0_16, %c1_17] : memref<4x1x8x256xf32, #tpu.memory_space<vmem>>, vector<1x1x8x128xf32>
    %14 = vector.shape_cast %13 : vector<1x1x8x128xf32> to vector<8x128xf32>
    %c2 = arith.constant 2 : index
    %c0_18 = arith.constant 0 : index
    %c0_19 = arith.constant 0 : index
    %15 = vector.load %arg2[%c2, %c0_18, %c0_19] : memref<9x8x8xf32, #tpu.memory_space<vmem>>, vector<1x8x8xf32>
    %16 = vector.shape_cast %15 : vector<1x8x8xf32> to vector<8x8xf32>
    %cst_20 = arith.constant dense<0.000000e+00> : vector<8x128xf32>
    %17 = tpu.matmul %16, %14, %cst_20 {dimension_numbers = #tpu.dot_dimension_numbers<[1], [0], [0], [1], [0, 0, 1, 1], [], []>} : vector<8x8xf32>, vector<8x128xf32>, vector<8x128xf32> -> vector<8x128xf32>
    %18 = arith.addf %12, %17 : vector<8x128xf32>
    %c2_21 = arith.constant 2 : index
    %c0_22 = arith.constant 0 : index
    %c0_23 = arith.constant 0 : index
    %c0_24 = arith.constant 0 : index
    %19 = vector.load %arg1[%c2_21, %c0_22, %c0_23, %c0_24] : memref<4x1x8x256xf32, #tpu.memory_space<vmem>>, vector<1x1x8x128xf32>
    %20 = vector.shape_cast %19 : vector<1x1x8x128xf32> to vector<8x128xf32>
    %c3 = arith.constant 3 : index
    %c0_25 = arith.constant 0 : index
    %c0_26 = arith.constant 0 : index
    %21 = vector.load %arg2[%c3, %c0_25, %c0_26] : memref<9x8x8xf32, #tpu.memory_space<vmem>>, vector<1x8x8xf32>
    %22 = vector.shape_cast %21 : vector<1x8x8xf32> to vector<8x8xf32>
    %cst_27 = arith.constant dense<0.000000e+00> : vector<8x128xf32>
    %23 = tpu.matmul %22, %20, %cst_27 {dimension_numbers = #tpu.dot_dimension_numbers<[1], [0], [0], [1], [0, 0, 1, 1], [], []>} : vector<8x8xf32>, vector<8x128xf32>, vector<8x128xf32> -> vector<8x128xf32>
    %24 = arith.addf %18, %23 : vector<8x128xf32>
    %c3_28 = arith.constant 3 : index
    %c0_29 = arith.constant 0 : index
    %c0_30 = arith.constant 0 : index
    %c0_31 = arith.constant 0 : index
    %25 = vector.load %arg1[%c3_28, %c0_29, %c0_30, %c0_31] : memref<4x1x8x256xf32, #tpu.memory_space<vmem>>, vector<1x1x8x128xf32>
    %26 = vector.shape_cast %25 : vector<1x1x8x128xf32> to vector<8x128xf32>
    %c4 = arith.constant 4 : index
    %c0_32 = arith.constant 0 : index
    %c0_33 = arith.constant 0 : index
    %27 = vector.load %arg2[%c4, %c0_32, %c0_33] : memref<9x8x8xf32, #tpu.memory_space<vmem>>, vector<1x8x8xf32>
    %28 = vector.shape_cast %27 : vector<1x8x8xf32> to vector<8x8xf32>
    %cst_34 = arith.constant dense<0.000000e+00> : vector<8x128xf32>
    %29 = tpu.matmul %28, %26, %cst_34 {dimension_numbers = #tpu.dot_dimension_numbers<[1], [0], [0], [1], [0, 0, 1, 1], [], []>} : vector<8x8xf32>, vector<8x128xf32>, vector<8x128xf32> -> vector<8x128xf32>
    %30 = arith.addf %24, %29 : vector<8x128xf32>
    %c2_35 = arith.constant 2 : index
    %c0_36 = arith.constant 0 : index
    %c0_37 = arith.constant 0 : index
    %c1_38 = arith.constant 1 : index
    %31 = vector.load %arg1[%c2_35, %c0_36, %c0_37, %c1_38] : memref<4x1x8x256xf32, #tpu.memory_space<vmem>>, vector<1x1x8x128xf32>
    %32 = vector.shape_cast %31 : vector<1x1x8x128xf32> to vector<8x128xf32>
    %c5 = arith.constant 5 : index
    %c0_39 = arith.constant 0 : index
    %c0_40 = arith.constant 0 : index
    %33 = vector.load %arg2[%c5, %c0_39, %c0_40] : memref<9x8x8xf32, #tpu.memory_space<vmem>>, vector<1x8x8xf32>
    %34 = vector.shape_cast %33 : vector<1x8x8xf32> to vector<8x8xf32>
    %cst_41 = arith.constant dense<0.000000e+00> : vector<8x128xf32>
    %35 = tpu.matmul %34, %32, %cst_41 {dimension_numbers = #tpu.dot_dimension_numbers<[1], [0], [0], [1], [0, 0, 1, 1], [], []>} : vector<8x8xf32>, vector<8x128xf32>, vector<8x128xf32> -> vector<8x128xf32>
    %36 = arith.addf %30, %35 : vector<8x128xf32>
    %c0_42 = arith.constant 0 : index
    %c0_43 = arith.constant 0 : index
    %c0_44 = arith.constant 0 : index
    %c9 = arith.constant 9 : index
    %37 = vector.load %arg1[%c0_42, %c0_43, %c0_44, %c9] : memref<4x1x8x256xf32, #tpu.memory_space<vmem>>, vector<1x1x8x128xf32>
    %38 = vector.shape_cast %37 : vector<1x1x8x128xf32> to vector<8x128xf32>
    %c6 = arith.constant 6 : index
    %c0_45 = arith.constant 0 : index
    %c0_46 = arith.constant 0 : index
    %39 = vector.load %arg2[%c6, %c0_45, %c0_46] : memref<9x8x8xf32, #tpu.memory_space<vmem>>, vector<1x8x8xf32>
    %40 = vector.shape_cast %39 : vector<1x8x8xf32> to vector<8x8xf32>
    %cst_47 = arith.constant dense<0.000000e+00> : vector<8x128xf32>
    %41 = tpu.matmul %40, %38, %cst_47 {dimension_numbers = #tpu.dot_dimension_numbers<[1], [0], [0], [1], [0, 0, 1, 1], [], []>} : vector<8x8xf32>, vector<8x128xf32>, vector<8x128xf32> -> vector<8x128xf32>
    %42 = arith.addf %36, %41 : vector<8x128xf32>
    %c1_48 = arith.constant 1 : index
    %c0_49 = arith.constant 0 : index
    %c0_50 = arith.constant 0 : index
    %c9_51 = arith.constant 9 : index
    %43 = vector.load %arg1[%c1_48, %c0_49, %c0_50, %c9_51] : memref<4x1x8x256xf32, #tpu.memory_space<vmem>>, vector<1x1x8x128xf32>
    %44 = vector.shape_cast %43 : vector<1x1x8x128xf32> to vector<8x128xf32>
    %c7 = arith.constant 7 : index
    %c0_52 = arith.constant 0 : index
    %c0_53 = arith.constant 0 : index
    %45 = vector.load %arg2[%c7, %c0_52, %c0_53] : memref<9x8x8xf32, #tpu.memory_space<vmem>>, vector<1x8x8xf32>
    %46 = vector.shape_cast %45 : vector<1x8x8xf32> to vector<8x8xf32>
    %cst_54 = arith.constant dense<0.000000e+00> : vector<8x128xf32>
    %47 = tpu.matmul %46, %44, %cst_54 {dimension_numbers = #tpu.dot_dimension_numbers<[1], [0], [0], [1], [0, 0, 1, 1], [], []>} : vector<8x8xf32>, vector<8x128xf32>, vector<8x128xf32> -> vector<8x128xf32>
    %48 = arith.addf %42, %47 : vector<8x128xf32>
    %c0_55 = arith.constant 0 : index
    %c0_56 = arith.constant 0 : index
    %c0_57 = arith.constant 0 : index
    %c10 = arith.constant 10 : index
    %49 = vector.load %arg1[%c0_55, %c0_56, %c0_57, %c10] : memref<4x1x8x256xf32, #tpu.memory_space<vmem>>, vector<1x1x8x128xf32>
    %50 = vector.shape_cast %49 : vector<1x1x8x128xf32> to vector<8x128xf32>
    %c8 = arith.constant 8 : index
    %c0_58 = arith.constant 0 : index
    %c0_59 = arith.constant 0 : index
    %51 = vector.load %arg2[%c8, %c0_58, %c0_59] : memref<9x8x8xf32, #tpu.memory_space<vmem>>, vector<1x8x8xf32>
    %52 = vector.shape_cast %51 : vector<1x8x8xf32> to vector<8x8xf32>
    %cst_60 = arith.constant dense<0.000000e+00> : vector<8x128xf32>
    %53 = tpu.matmul %52, %50, %cst_60 {dimension_numbers = #tpu.dot_dimension_numbers<[1], [0], [0], [1], [0, 0, 1, 1], [], []>} : vector<8x8xf32>, vector<8x128xf32>, vector<8x128xf32> -> vector<8x128xf32>
    %54 = arith.addf %48, %53 : vector<8x128xf32>
    %55 = vector.shape_cast %54 : vector<8x128xf32> to vector<1x8x128xf32>
    %c0_61 = arith.constant 0 : index
    %c0_62 = arith.constant 0 : index
    %c0_63 = arith.constant 0 : index
    %56 = vector.load %arg4[%c0_61, %c0_62, %c0_63] : memref<1x8x128xf32, #tpu.memory_space<vmem>>, vector<1x8x128xf32>
    tpu.vector_store %arg4[%c0_61, %c0_62, %c0_63], %55 {strides = array<i32>} : memref<1x8x128xf32, #tpu.memory_space<vmem>>, vector<1x8x128xf32>,
    %c0_64 = arith.constant 0 : index
    %c0_65 = arith.constant 0 : index
    %57 = vector.load %arg3[%c0_64, %c0_65] : memref<1x128xf32, #tpu.memory_space<vmem>>, vector<1x128xf32>
    %58 = vector.broadcast %57 : vector<1x128xf32> to vector<8x128xf32>
    %59 = arith.mulf %54, %58 : vector<8x128xf32>
    %cst_66 = arith.constant dense<0.000000e+00> : vector<8xf32>
    %60 = vector.multi_reduction <add>, %59, %cst_66 [1] : vector<8x128xf32> to vector<8xf32>
    %61 = vector.shape_cast %60 : vector<8xf32> to vector<8x1xf32>
    %62 = arith.mulf %59, %59 : vector<8x128xf32>
    %cst_67 = arith.constant dense<0.000000e+00> : vector<8xf32>
    %63 = vector.multi_reduction <add>, %62, %cst_67 [1] : vector<8x128xf32> to vector<8xf32>
    %64 = vector.shape_cast %63 : vector<8xf32> to vector<8x1xf32>
    %65 = tpu.concatenate %61, %64 in 1 : vector<8x1xf32>, vector<8x1xf32> -> vector<8x2xf32>
    %66 = vector.shape_cast %65 : vector<8x2xf32> to vector<1x8x2xf32>
    %c0_68 = arith.constant 0 : index
    %c0_69 = arith.constant 0 : index
    %c0_70 = arith.constant 0 : index
    %67 = vector.load %arg5[%c0_68, %c0_69, %c0_70] : memref<1x8x2xf32, #tpu.memory_space<vmem>>, vector<1x8x2xf32>
    tpu.vector_store %arg5[%c0_68, %c0_69, %c0_70], %66 {strides = array<i32>} : memref<1x8x2xf32, #tpu.memory_space<vmem>>, vector<1x8x2xf32>,
    return
  }
  func.func @transform_0(%arg0: i32) -> (i32, i32, i32, i32) {
    %c0_i32 = arith.constant 0 : i32
    %c0_i32_0 = arith.constant 0 : i32
    %c0_i32_1 = arith.constant 0 : i32
    %c0_i32_2 = arith.constant 0 : i32
    return %c0_i32, %arg0, %c0_i32_0, %c0_i32_1 : i32, i32, i32, i32
  }
  func.func @transform_1(%arg0: i32) -> (i32, i32, i32) {
    %c0_i32 = arith.constant 0 : i32
    %c0_i32_0 = arith.constant 0 : i32
    %c0_i32_1 = arith.constant 0 : i32
    %c0_i32_2 = arith.constant 0 : i32
    return %c0_i32, %c0_i32_0, %c0_i32_1 : i32, i32, i32
  }
  func.func @transform_2(%arg0: i32) -> (i32, i32) {
    %c0_i32 = arith.constant 0 : i32
    %c0_i32_0 = arith.constant 0 : i32
    %c0_i32_1 = arith.constant 0 : i32
    return %c0_i32, %c0_i32_0 : i32, i32
  }
  func.func @transform_3(%arg0: i32) -> (i32, i32, i32) {
    %c0_i32 = arith.constant 0 : i32
    %c0_i32_0 = arith.constant 0 : i32
    %c0_i32_1 = arith.constant 0 : i32
    return %arg0, %c0_i32, %c0_i32_0 : i32, i32, i32
  }
  func.func @transform_4(%arg0: i32) -> (i32, i32, i32) {
    %c0_i32 = arith.constant 0 : i32
    %c0_i32_0 = arith.constant 0 : i32
    %c0_i32_1 = arith.constant 0 : i32
    return %arg0, %c0_i32, %c0_i32_0 : i32, i32, i32
  }
}

</mosaic_0001>

<llo_original>
// kernel: conv_pool_forward.3
$region0: #{conv_pool_forward.3}
  #allocation0 [shape = 'u32[]', space=smem, size = 0x4, offset = 0x4, fixed_abs, tag = 'smem constant byte address 0x4 - core index']
  #allocation1 [shape = 'u32[144,128]{1,0:T(1,128)}', space=vmem, size = 0x12000, scoped, tag = 'internal scratch']
  %s0 = inlined_call_operand.vmem [shape: f32[2,8,128], index: 0, kind: input, shape index: {}, may-alias: {0,3}]
  %s1 = inlined_call_operand.vmem [shape: f32[1,8,1], index: 1, kind: input, shape index: {}]
  %s2 = inlined_call_operand.vmem [shape: f32[1,8,1], index: 2, kind: input, shape index: {}]
  %s3 = inlined_call_operand.vmem [shape: f32[2,8,128], index: 3, kind: output, shape index: {}, may-alias: {0,3}]
  %s4 = sld [smem:[#allocation0]]
  $region45: #{conv_pool_forward.3} parent=0
    _
  %s6 = ssub.s32 1, %s4
  %s7 = scalar_select 0, %s6, %s4
  loop: start=0, step=1, limit=4
  $region2: #{conv_pool_forward.3} parent=0 // loop_pre_header
    _
  $region3: #{conv_pool_forward.3} parent=0 // loop_header
    %s9 = sphi 0, %s13
    %p10 = scmp.ge.s32.totalorder %s9, 4
    %s19 = sphi 0, %s21
    %s22 = sphi 0, %s19
    %s23 = sphi 0, %s22
    %s39 = sphi 0, %s23
    %s43 = sphi 0, %s43
    %s45 = sphi 0, %s43
    %s46 = sphi 0, %s45
    %s60 = sphi 0, %s46
    %s64 = sphi 0, %s64
    %s66 = sphi 0, %s64
    %s67 = sphi 0, %s66
    %s81 = sphi 0, %s67
    %s87 = sphi 0, %s89
    %s90 = sphi 0, %s87
    %s91 = sphi 0, %s90
    %s107 = sphi 0, %s91
  $region4: #{conv_pool_forward.3} parent=0 // loop_header_branch
    %12 = sbr.rel (%p10) target = $region8
  $region5: #{conv_pool_forward.3} parent=0 // loop_body
    %s14 = ssub.s32 %s9, 1
    %s15 = ssub.s32 %s9, 2
    %s16 = sadd.s32 %s9, 1
    %s17 = ssub.s32 %s9, %s16
    %p18 = scmp.eq.s32.totalorder %s17, 0
    %s20 = sadd.s32 %s19, 1
    %s21 = scalar_select %p18, %s19, %s20
    %p24 = pneg %p18
    %p25 = scmp.eq.s32.totalorder %s9, 1
    %p26 = por %p24, %p25
    %p27 = scmp.ne.s32.totalorder %s19, %s22
    %p28 = scmp.eq.s32.totalorder %s9, 0
    %p29 = por %p27, %p28
    %p30 = scmp.ne.s32.totalorder %s19, %s22
    %p31 = scmp.eq.s32.totalorder %s14, 1
    %p32 = por %p30, %p31
    %p33 = scmp.ne.s32.totalorder %s22, %s23
    %p34 = scmp.eq.s32.totalorder %s14, 0
    %p35 = por %p33, %p34
    %p36 = scmp.ne.s32.totalorder %s22, %s23
    %p37 = scmp.eq.s32.totalorder %s15, 1
    %p38 = por %p36, %p37
    %p40 = scmp.ne.s32.totalorder %s23, %s39
    %p41 = scmp.eq.s32.totalorder %s15, 0
    %p42 = por %p40, %p41
    %s44 = sadd.s32 %s43, 1
    %p47 = scmp.eq.s32.totalorder %s9, 1
    %p48 = scmp.ne.s32.totalorder %s43, %s45
    %p49 = scmp.eq.s32.totalorder %s9, 0
    %p50 = por %p48, %p49
    %p51 = scmp.ne.s32.totalorder %s43, %s45
    %p52 = scmp.eq.s32.totalorder %s14, 1
    %p53 = por %p51, %p52
    %p54 = scmp.ne.s32.totalorder %s45, %s46
    %p55 = scmp.eq.s32.totalorder %s14, 0
    %p56 = por %p54, %p55
    %p57 = scmp.ne.s32.totalorder %s45, %s46
    %p58 = scmp.eq.s32.totalorder %s15, 1
    %p59 = por %p57, %p58
    %p61 = scmp.ne.s32.totalorder %s46, %s60
    %p62 = scmp.eq.s32.totalorder %s15, 0
    %p63 = por %p61, %p62
    %s65 = sadd.s32 %s64, 1
    %p68 = scmp.eq.s32.totalorder %s9, 1
    %p69 = scmp.ne.s32.totalorder %s64, %s66
    %p70 = scmp.eq.s32.totalorder %s9, 0
    %p71 = por %p69, %p70
    %p72 = scmp.ne.s32.totalorder %s64, %s66
    %p73 = scmp.eq.s32.totalorder %s14, 1
    %p74 = por %p72, %p73
    %p75 = scmp.ne.s32.totalorder %s66, %s67
    %p76 = scmp.eq.s32.totalorder %s14, 0
    %p77 = por %p75, %p76
    %p78 = scmp.ne.s32.totalorder %s66, %s67
    %p79 = scmp.eq.s32.totalorder %s15, 1
    %p80 = por %p78, %p79
    %p82 = scmp.ne.s32.totalorder %s67, %s81
    %p83 = scmp.eq.s32.totalorder %s15, 0
    %p84 = por %p82, %p83
    %s85 = ssub.s32 %s9, %s16
    %p86 = scmp.eq.s32.totalorder %s85, 0
    %s88 = sadd.s32 %s87, 1
    %s89 = scalar_select %p86, %s87, %s88
    %p92 = pneg %p86
    %p93 = scmp.eq.s32.totalorder %s9, 1
    %p94 = por %p92, %p93
    %p95 = scmp.ne.s32.totalorder %s87, %s90
    %p96 = scmp.eq.s32.totalorder %s9, 0
    %p97 = por %p95, %p96
    %p98 = scmp.ne.s32.totalorder %s87, %s90
    %p99 = scmp.eq.s32.totalorder %s14, 1
    %p100 = por %p98, %p99
    %p101 = scmp.ne.s32.totalorder %s90, %s91
    %p102 = scmp.eq.s32.totalorder %s14, 0
    %p103 = por %p101, %p102
    %p104 = scmp.ne.s32.totalorder %s90, %s91
    %p105 = scmp.eq.s32.totalorder %s15, 1
    %p106 = por %p104, %p105
    %p108 = scmp.ne.s32.totalorder %s91, %s107
    %p109 = scmp.eq.s32.totalorder %s15, 0
    %p110 = por %p108, %p109
    %p111 = scmp.le.s32.totalorder 1, %s9
    %p112 = scmp.lt.s32.totalorder %s9, 3
    %p113 = pnand %p111, %p112
    %p114 = pneg %p113
    // Predicated region
    $region9: #{conv_pool_forward.3} parent=5 // pred_check
      _
    $region10: #{conv_pool_forward.3} parent=5 // pred_check_branch
      %116 = sbr.rel (%p113) target = $region12
    $region11: #{conv_pool_forward.3} parent=5 // pred_region
      %s117 = ssub.s32 %s9, 1
      // Predicated region
      $region13: #{conv_pool_forward.3} parent=11 // pred_check
        %p118 = pneg %p56
      $region14: #{conv_pool_forward.3} parent=11 // pred_check_branch
        %120 = sbr.rel (%p118) target = $region16
      $region15: #{conv_pool_forward.3} parent=11 // pred_region
        _
      $region16: #{conv_pool_forward.3} parent=11 // pred_fallthru
        _
      // Predicated region
      $region17: #{conv_pool_forward.3} parent=11 // pred_check
        %p121 = pneg %p77
      $region18: #{conv_pool_forward.3} parent=11 // pred_check_branch
        %123 = sbr.rel (%p121) target = $region20
      $region19: #{conv_pool_forward.3} parent=11 // pred_region
        _
      $region20: #{conv_pool_forward.3} parent=11 // pred_fallthru
        _
    $region12: #{conv_pool_forward.3} parent=5 // pred_fallthru
      _
    %p124 = scmp.lt.s32.totalorder %s9, 2
    // Predicated region
    $region21: #{conv_pool_forward.3} parent=5 // pred_check
      %p125 = pneg %p124
    $region22: #{conv_pool_forward.3} parent=5 // pred_check_branch
      %127 = sbr.rel (%p125) target = $region24
    $region23: #{conv_pool_forward.3} parent=5 // pred_region
      // Predicated region
      $region25: #{conv_pool_forward.3} parent=23 // pred_check
        %p128 = pneg %p29
      $region26: #{conv_pool_forward.3} parent=23 // pred_check_branch
        %130 = sbr.rel (%p128) target = $region28
      $region27: #{conv_pool_forward.3} parent=23 // pred_region
        %p131 = scmp.lt.s32.totalorder %s9, 1
        %s132 = scalar_select %p131, %s9, 1
        %s133 = smul.addr %s132, 8
        %s134 = scalar_lea.vmem %s0, %s133
      $region28: #{conv_pool_forward.3} parent=23 // pred_fallthru
        _
    $region24: #{conv_pool_forward.3} parent=5 // pred_fallthru
      _
    %p135 = scmp.le.s32.totalorder 1, %s9
    %p136 = scmp.lt.s32.totalorder %s9, 3
    %p137 = pnand %p135, %p136
    %p138 = pneg %p137
    // Predicated region
    $region29: #{conv_pool_forward.3} parent=5 // pred_check
      _
    $region30: #{conv_pool_forward.3} parent=5 // pred_check_branch
      %140 = sbr.rel (%p137) target = $region32
    $region31: #{conv_pool_forward.3} parent=5 // pred_region
      %s141 = ssub.s32 %s9, 1
      %p142 = scmp.lt.s32.totalorder %s14, 1
      %s143 = scalar_select %p142, %s14, 1
      %s144 = smul.addr %s143, 8
      %s145 = scalar_lea.vmem %s0, %s144
      %p146 = pneg %p35
      %p147 = pneg %p32
      %p148 = pneg %p56
      %p149 = pneg %p53
      %p150 = pneg %p77
      %p151 = pneg %p74
      %p152 = pneg %p103
      %p153 = pneg %p100
      %p154 = scmp.lt.s32.totalorder %s14, 1
      %s155 = scalar_select %p154, %s14, 1
      %s156 = smul.addr %s155, 8
      %s157 = scalar_lea.vmem %s3, %s156
      %p158 = scmp.lt.s32.totalorder %s14, 1
      %s159 = scalar_select %p158, %s14, 1
      %s160 = smul.addr %s159, 8
      %s161 = scalar_lea.vmem %s0, %s160
      %p162 = scmp.lt.s32.totalorder %s14, 1
      %s163 = scalar_select %p162, %s14, 1
      %s164 = smul.addr %s163, 8
      %s165 = scalar_lea.vmem %s3, %s164
      %v166 = vld [vmem:[%s161] sm:$0xff]
      %v167 = vld [vmem:[%s1] sm:$0xff]
      %169 = vset.pattern.permute.xlu0 0
      %170 = vperm.xlu0 %169, %v167
      %v171 = vpop.permute.xlu0 %170
      %v173 = vmul.f32 %v166, %v171
      %v174 = vld [vmem:[%s2] sm:$0xff]
      %176 = vset.pattern.permute.xlu0 0
      %177 = vperm.xlu0 %176, %v174
      %v178 = vpop.permute.xlu0 %177
      %v180 = vadd.f32 %v173, %v178
      %v181 = vmax.f32 %v180, 0.0
      %182 = vst [vmem:[%s165] sm:$0xff] %v181
      %p183 = scmp.lt.s32.totalorder %s14, 1
      %s184 = scalar_select %p183, %s14, 1
      %s185 = smul.addr %s184, 8
      %s186 = scalar_lea.vmem %s3, %s185
      // Predicated region
      $region33: #{conv_pool_forward.3} parent=31 // pred_check
        %p187 = pneg %p100
      $region34: #{conv_pool_forward.3} parent=31 // pred_check_branch
        %189 = sbr.rel (%p187) target = $region36
      $region35: #{conv_pool_forward.3} parent=31 // pred_region
        _
      $region36: #{conv_pool_forward.3} parent=31 // pred_fallthru
        _
    $region32: #{conv_pool_forward.3} parent=5 // pred_fallthru
      _
    %p190 = scmp.le.s32.totalorder 2, %s9
    // Predicated region
    $region37: #{conv_pool_forward.3} parent=5 // pred_check
      %p191 = pneg %p190
    $region38: #{conv_pool_forward.3} parent=5 // pred_check_branch
      %193 = sbr.rel (%p191) target = $region40
    $region39: #{conv_pool_forward.3} parent=5 // pred_region
      %s194 = ssub.s32 %s9, 2
      // Predicated region
      $region41: #{conv_pool_forward.3} parent=39 // pred_check
        %p195 = pneg %p106
      $region42: #{conv_pool_forward.3} parent=39 // pred_check_branch
        %197 = sbr.rel (%p195) target = $region44
      $region43: #{conv_pool_forward.3} parent=39 // pred_region
        %p198 = scmp.lt.s32.totalorder %s15, 1
        %s199 = scalar_select %p198, %s15, 1
        %s200 = smul.addr %s199, 8
        %s201 = scalar_lea.vmem %s3, %s200
      $region44: #{conv_pool_forward.3} parent=39 // pred_fallthru
        _
    $region40: #{conv_pool_forward.3} parent=5 // pred_fallthru
      _
  $region6: #{conv_pool_forward.3} parent=0 // loop_footer
    %s13 = sadd.s32 1, %s9
  $region7: #{conv_pool_forward.3} parent=0 // loop_footer_branch
    %8 = sbr.rel target = $region3
  $region8: #{conv_pool_forward.3} parent=0 // loop_exit
    _

// kernel: conv_pool_forward.2
$region0: #{conv_pool_forward.2}
  #allocation0 [shape = 'u32[]', space=smem, size = 0x4, offset = 0x4, fixed_abs, tag = 'smem constant byte address 0x4 - core index']
  #allocation1 [shape = 'u32[144,128]{1,0:T(1,128)}', space=vmem, size = 0x12000, scoped, tag = 'internal scratch']
  %s0 = inlined_call_operand.vmem [shape: f32[4,2,8,256], index: 0, kind: input, shape index: {}]
  %s1 = inlined_call_operand.vmem [shape: f32[9,8,8], index: 1, kind: input, shape index: {}]
  %s2 = inlined_call_operand.vmem [shape: f32[1,128], index: 2, kind: input, shape index: {}]
  %s3 = inlined_call_operand.vmem [shape: f32[2,8,128], index: 3, kind: output, shape index: {0}]
  %s4 = inlined_call_operand.vmem [shape: f32[2,8,2], index: 4, kind: output, shape index: {1}]
  %5 = xla_tuple %s3, %s4
  %s6 = sld [smem:[#allocation0]]
  $region76: #{conv_pool_forward.2} parent=0
    _
  %s8 = ssub.s32 1, %s6
  %s9 = scalar_select 0, %s8, %s6
  $region1: #{conv_pool_forward.2} parent=0
    #allocation2 [shape = 'u8[65536]{0}', space=vmem, size = 0x10000, scoped, tag = 'input window, operand 0']
    loop: start=0, step=1, limit=4
    $region2: #{conv_pool_forward.2} parent=1 // loop_pre_header
      _
    $region3: #{conv_pool_forward.2} parent=1 // loop_header
      %s11 = sphi 0, %s15
      %p12 = scmp.ge.s32.totalorder %s11, 4
      %s21 = sphi 0, %s23
      %s24 = sphi 0, %s21
      %s25 = sphi 0, %s24
      %s41 = sphi 0, %s25
      %s45 = sphi 0, %s45
      %s47 = sphi 0, %s45
      %s48 = sphi 0, %s47
      %s62 = sphi 0, %s48
      %s66 = sphi 0, %s66
      %s68 = sphi 0, %s66
      %s69 = sphi 0, %s68
      %s83 = sphi 0, %s69
      %s89 = sphi 0, %s91
      %s92 = sphi 0, %s89
      %s93 = sphi 0, %s92
      %s109 = sphi 0, %s93
      %s115 = sphi 0, %s117
      %s118 = sphi 0, %s115
      %s119 = sphi 0, %s118
      %s135 = sphi 0, %s119
    $region4: #{conv_pool_forward.2} parent=1 // loop_header_branch
      %14 = sbr.rel (%p12) target = $region8
    $region5: #{conv_pool_forward.2} parent=1 // loop_body
      %s16 = ssub.s32 %s11, 1
      %s17 = ssub.s32 %s11, 2
      %s18 = sadd.s32 %s11, 1
      %s19 = ssub.s32 %s11, %s18
      %p20 = scmp.eq.s32.totalorder %s19, 0
      %s22 = sadd.s32 %s21, 1
      %s23 = scalar_select %p20, %s21, %s22
      %p26 = pneg %p20
      %p27 = scmp.eq.s32.totalorder %s11, 1
      %p28 = por %p26, %p27
      %p29 = scmp.ne.s32.totalorder %s21, %s24
      %p30 = scmp.eq.s32.totalorder %s11, 0
      %p31 = por %p29, %p30
      %p32 = scmp.ne.s32.totalorder %s21, %s24
      %p33 = scmp.eq.s32.totalorder %s16, 1
      %p34 = por %p32, %p33
      %p35 = scmp.ne.s32.totalorder %s24, %s25
      %p36 = scmp.eq.s32.totalorder %s16, 0
      %p37 = por %p35, %p36
      %p38 = scmp.ne.s32.totalorder %s24, %s25
      %p39 = scmp.eq.s32.totalorder %s17, 1
      %p40 = por %p38, %p39
      %p42 = scmp.ne.s32.totalorder %s25, %s41
      %p43 = scmp.eq.s32.totalorder %s17, 0
      %p44 = por %p42, %p43
      %s46 = sadd.s32 %s45, 1
      %p49 = scmp.eq.s32.totalorder %s11, 1
      %p50 = scmp.ne.s32.totalorder %s45, %s47
      %p51 = scmp.eq.s32.totalorder %s11, 0
      %p52 = por %p50, %p51
      %p53 = scmp.ne.s32.totalorder %s45, %s47
      %p54 = scmp.eq.s32.totalorder %s16, 1
      %p55 = por %p53, %p54
      %p56 = scmp.ne.s32.totalorder %s47, %s48
      %p57 = scmp.eq.s32.totalorder %s16, 0
      %p58 = por %p56, %p57
      %p59 = scmp.ne.s32.totalorder %s47, %s48
      %p60 = scmp.eq.s32.totalorder %s17, 1
      %p61 = por %p59, %p60
      %p63 = scmp.ne.s32.totalorder %s48, %s62
      %p64 = scmp.eq.s32.totalorder %s17, 0
      %p65 = por %p63, %p64
      %s67 = sadd.s32 %s66, 1
      %p70 = scmp.eq.s32.totalorder %s11, 1
      %p71 = scmp.ne.s32.totalorder %s66, %s68
      %p72 = scmp.eq.s32.totalorder %s11, 0
      %p73 = por %p71, %p72
      %p74 = scmp.ne.s32.totalorder %s66, %s68
      %p75 = scmp.eq.s32.totalorder %s16, 1
      %p76 = por %p74, %p75
      %p77 = scmp.ne.s32.totalorder %s68, %s69
      %p78 = scmp.eq.s32.totalorder %s16, 0
      %p79 = por %p77, %p78
      %p80 = scmp.ne.s32.totalorder %s68, %s69
      %p81 = scmp.eq.s32.totalorder %s17, 1
      %p82 = por %p80, %p81
      %p84 = scmp.ne.s32.totalorder %s69, %s83
      %p85 = scmp.eq.s32.totalorder %s17, 0
      %p86 = por %p84, %p85
      %s87 = ssub.s32 %s11, %s18
      %p88 = scmp.eq.s32.totalorder %s87, 0
      %s90 = sadd.s32 %s89, 1
      %s91 = scalar_select %p88, %s89, %s90
      %p94 = pneg %p88
      %p95 = scmp.eq.s32.totalorder %s11, 1
      %p96 = por %p94, %p95
      %p97 = scmp.ne.s32.totalorder %s89, %s92
      %p98 = scmp.eq.s32.totalorder %s11, 0
      %p99 = por %p97, %p98
      %p100 = scmp.ne.s32.totalorder %s89, %s92
      %p101 = scmp.eq.s32.totalorder %s16, 1
      %p102 = por %p100, %p101
      %p103 = scmp.ne.s32.totalorder %s92, %s93
      %p104 = scmp.eq.s32.totalorder %s16, 0
      %p105 = por %p103, %p104
      %p106 = scmp.ne.s32.totalorder %s92, %s93
      %p107 = scmp.eq.s32.totalorder %s17, 1
      %p108 = por %p106, %p107
      %p110 = scmp.ne.s32.totalorder %s93, %s109
      %p111 = scmp.eq.s32.totalorder %s17, 0
      %p112 = por %p110, %p111
      %s113 = ssub.s32 %s11, %s18
      %p114 = scmp.eq.s32.totalorder %s113, 0
      %s116 = sadd.s32 %s115, 1
      %s117 = scalar_select %p114, %s115, %s116
      %p120 = pneg %p114
      %p121 = scmp.eq.s32.totalorder %s11, 1
      %p122 = por %p120, %p121
      %p123 = scmp.ne.s32.totalorder %s115, %s118
      %p124 = scmp.eq.s32.totalorder %s11, 0
      %p125 = por %p123, %p124
      %p126 = scmp.ne.s32.totalorder %s115, %s118
      %p127 = scmp.eq.s32.totalorder %s16, 1
      %p128 = por %p126, %p127
      %p129 = scmp.ne.s32.totalorder %s118, %s119
      %p130 = scmp.eq.s32.totalorder %s16, 0
      %p131 = por %p129, %p130
      %p132 = scmp.ne.s32.totalorder %s118, %s119
      %p133 = scmp.eq.s32.totalorder %s17, 1
      %p134 = por %p132, %p133
      %p136 = scmp.ne.s32.totalorder %s119, %s135
      %p137 = scmp.eq.s32.totalorder %s17, 0
      %p138 = por %p136, %p137
      %p139 = scmp.le.s32.totalorder 1, %s11
      %p140 = scmp.lt.s32.totalorder %s11, 3
      %p141 = pnand %p139, %p140
      %p142 = pneg %p141
      // Predicated region
      $region9: #{conv_pool_forward.2} parent=5 // pred_check
        _
      $region10: #{conv_pool_forward.2} parent=5 // pred_check_branch
        %144 = sbr.rel (%p141) target = $region12
      $region11: #{conv_pool_forward.2} parent=5 // pred_region
        %s145 = ssub.s32 %s11, 1
        // Predicated region
        $region13: #{conv_pool_forward.2} parent=11 // pred_check
          %p146 = pneg %p58
        $region14: #{conv_pool_forward.2} parent=11 // pred_check_branch
          %148 = sbr.rel (%p146) target = $region16
        $region15: #{conv_pool_forward.2} parent=11 // pred_region
          _
        $region16: #{conv_pool_forward.2} parent=11 // pred_fallthru
          _
        // Predicated region
        $region17: #{conv_pool_forward.2} parent=11 // pred_check
          %p149 = pneg %p79
        $region18: #{conv_pool_forward.2} parent=11 // pred_check_branch
          %151 = sbr.rel (%p149) target = $region20
        $region19: #{conv_pool_forward.2} parent=11 // pred_region
          _
        $region20: #{conv_pool_forward.2} parent=11 // pred_fallthru
          _
      $region12: #{conv_pool_forward.2} parent=5 // pred_fallthru
        _
      %p152 = scmp.lt.s32.totalorder %s11, 2
      // Predicated region
      $region21: #{conv_pool_forward.2} parent=5 // pred_check
        %p153 = pneg %p152
      $region22: #{conv_pool_forward.2} parent=5 // pred_check_branch
        %155 = sbr.rel (%p153) target = $region24
      $region23: #{conv_pool_forward.2} parent=5 // pred_region
        // Predicated region
        $region25: #{conv_pool_forward.2} parent=23 // pred_check
          %p156 = pneg %p31
        $region26: #{conv_pool_forward.2} parent=23 // pred_check_branch
          %158 = sbr.rel (%p156) target = $region28
        $region27: #{conv_pool_forward.2} parent=23 // pred_region
          %s159 = sand.u32 %s21, 1
          %s160 = sand.u32 %s21, 1
          %s161 = smul.addr %s160, 64
          %s162 = scalar_lea.vmem [#allocation2], %s161
          %s163 = smul.addr %s11, 2
          %s164 = smul.addr %s163, 8
          %s165 = scalar_lea.vmem %s0, %s164
          // Predicated region
          $region29: #{conv_pool_forward.2} parent=27 // pred_check
            _
          $region30: #{conv_pool_forward.2} parent=27 // pred_check_branch
            %167 = sbr.rel (0) target = $region32
          $region31: #{conv_pool_forward.2} parent=27 // pred_region
            // Predicated region
            $region33: #{conv_pool_forward.2} parent=31 // pred_check
              _
            $region34: #{conv_pool_forward.2} parent=31 // pred_check_branch
              %169 = sbr.rel (0) target = $region36
            $region35: #{conv_pool_forward.2} parent=31 // pred_region
              loop: start=0, step=1, limit=1
              $region37: #{conv_pool_forward.2} parent=35 // loop_pre_header
                _
              $region38: #{conv_pool_forward.2} parent=35 // loop_header
                %s171 = sphi 0, %s175
                %p172 = scmp.ge.s32.totalorder %s171, 1
                %s176 = sphi %s165, %s165
                %s177 = sphi %s162, %s162
              $region39: #{conv_pool_forward.2} parent=35 // loop_header_branch
                %174 = sbr.rel (%p172) target = $region43
              $region40: #{conv_pool_forward.2} parent=35 // loop_body
                %v178 = vld [vmem:[%s176] sm:$0xff]
                %179 = vst [vmem:[%s177] sm:$0xff] %v178
                %v180 = vld [vmem:[%s176 + $0x8] sm:$0xff]
                %181 = vst [vmem:[%s177 + $0x8] sm:$0xff] %v180
                %v182 = vld [vmem:[%s176 + $0x20] sm:$0xff]
                %183 = vst [vmem:[%s177 + $0x10] sm:$0xff] %v182
                %v184 = vld [vmem:[%s176 + $0x28] sm:$0xff]
                %185 = vst [vmem:[%s177 + $0x18] sm:$0xff] %v184
                %v186 = vld [vmem:[%s176 + $0x40] sm:$0xff]
                %187 = vst [vmem:[%s177 + $0x20] sm:$0xff] %v186
                %v188 = vld [vmem:[%s176 + $0x48] sm:$0xff]
                %189 = vst [vmem:[%s177 + $0x28] sm:$0xff] %v188
                %v190 = vld [vmem:[%s176 + $0x60] sm:$0xff]
                %191 = vst [vmem:[%s177 + $0x30] sm:$0xff] %v190
                %v192 = vld [vmem:[%s176 + $0x68] sm:$0xff]
                %193 = vst [vmem:[%s177 + $0x38] sm:$0xff] %v192
              $region41: #{conv_pool_forward.2} parent=35 // loop_footer
                %s175 = sadd.s32 1, %s171
              $region42: #{conv_pool_forward.2} parent=35 // loop_footer_branch
                %170 = sbr.rel target = $region38
              $region43: #{conv_pool_forward.2} parent=35 // loop_exit
                _
            $region36: #{conv_pool_forward.2} parent=31 // pred_fallthru
              _
            // Predicated region
            $region44: #{conv_pool_forward.2} parent=31 // pred_check
              _
            $region45: #{conv_pool_forward.2} parent=31 // pred_check_branch
              %195 = sbr.rel target = $region47
            $region46: #{conv_pool_forward.2} parent=31 // pred_region
              _
            $region47: #{conv_pool_forward.2} parent=31 // pred_fallthru
              _
          $region32: #{conv_pool_forward.2} parent=27 // pred_fallthru
            _
          %196 = vnop
        $region28: #{conv_pool_forward.2} parent=23 // pred_fallthru
          _
      $region24: #{conv_pool_forward.2} parent=5 // pred_fallthru
        _
      %p197 = scmp.le.s32.totalorder 1, %s11
      %p198 = scmp.lt.s32.totalorder %s11, 3
      %p199 = pnand %p197, %p198
      %p200 = pneg %p199
      // Predicated region
      $region48: #{conv_pool_forward.2} parent=5 // pred_check
        _
      $region49: #{conv_pool_forward.2} parent=5 // pred_check_branch
        %202 = sbr.rel (%p199) target = $region51
      $region50: #{conv_pool_forward.2} parent=5 // pred_region
        %s203 = ssub.s32 %s11, 1
        %s204 = sand.u32 %s24, 1
        %s205 = sand.u32 %s24, 1
        %s206 = smul.addr %s205, 64
        %s207 = scalar_lea.vmem [#allocation2], %s206
        // Predicated region
        $region52: #{conv_pool_forward.2} parent=50 // pred_check
          %p208 = pneg %p37
        $region53: #{conv_pool_forward.2} parent=50 // pred_check_branch
          %210 = sbr.rel (%p208) target = $region55
        $region54: #{conv_pool_forward.2} parent=50 // pred_region
          _
        $region55: #{conv_pool_forward.2} parent=50 // pred_fallthru
          _
        %s211 = sand.u32 %s24, 1
        %s212 = sand.u32 %s24, 1
        %s213 = smul.addr %s212, 64
        %s214 = scalar_lea.vmem [#allocation2], %s213
        %p215 = pneg %p37
        %p216 = pneg %p34
        %p217 = pneg %p58
        %p218 = pneg %p55
        %p219 = pneg %p79
        %p220 = pneg %p76
        %p221 = pneg %p105
        %p222 = pneg %p102
        %p223 = scmp.lt.s32.totalorder %s16, 1
        %s224 = scalar_select %p223, %s16, 1
        %s225 = smul.addr %s224, 8
        %s226 = scalar_lea.vmem %s3, %s225
        %p227 = pneg %p131
        %p228 = pneg %p128
        %p229 = scmp.lt.s32.totalorder %s16, 1
        %s230 = scalar_select %p229, %s16, 1
        %s231 = smul.addr %s230, 8
        %s232 = scalar_lea.vmem %s4, %s231
        %p233 = scmp.lt.s32.totalorder %s16, 1
        %s234 = scalar_select %p233, %s16, 1
        %s235 = smul.addr %s234, 8
        %s236 = scalar_lea.vmem %s3, %s235
        %p237 = scmp.lt.s32.totalorder %s16, 1
        %s238 = scalar_select %p237, %s16, 1
        %s239 = smul.addr %s238, 8
        %s240 = scalar_lea.vmem %s4, %s239
        %v241 = vld [vmem:[%s207] sm:$0xff]
        %v242 = vld [vmem:[%s1] sm:$0xff]
        %s243 = scalar_lea.vmem %s207, 16 [#allocation2]
        %v244 = vld [vmem:[%s243] sm:$0xff]
        %s245 = scalar_lea.vmem %s1, 8
        %v246 = vld [vmem:[%s245] sm:$0xff]
        %vm247 = vcmask 64512
        %v249 = vsel %vm247, %v246, 0
        %251 = vmatprep.subr.mxu0 0.0
        %252 = vmatpush1.msra.mxu0 %v244
        %253 = vmatprep.subr.mxu0 0.0
        %254 = vmatpush1.msra.mxu0 0.0
        %255 = vmatprep.subr.mxu0 0.0
        %256 = vmatpush1.msra.mxu0 0.0
        %257 = vmatprep.subr.mxu0 0.0
        %258 = vmatpush1.msra.mxu0 0.0
        %259 = vmatprep.subr.mxu0 0.0
        %260 = vmatpush1.msra.mxu0 0.0
        %261 = vmatprep.subr.mxu0 0.0
        %262 = vmatpush1.msra.mxu0 0.0
        %263 = vmatprep.subr.mxu0 0.0
        %264 = vmatpush1.msra.mxu0 0.0
        %265 = vmatprep.subr.mxu0 0.0
        %266 = vmatpush1.msra.mxu0 0.0
        %267 = vmatprep.subr.mxu0 0.0
        %268 = vmatpush1.msra.mxu0 0.0
        %269 = vmatprep.subr.mxu0 0.0
        %270 = vmatpush1.msra.mxu0 0.0
        %271 = vmatprep.subr.mxu0 0.0
        %272 = vmatpush1.msra.mxu0 0.0
        %273 = vmatprep.subr.mxu0 0.0
        %274 = vmatpush1.msra.mxu0 0.0
        %275 = vmatprep.subr.mxu0 0.0
        %276 = vmatpush1.msra.mxu0 0.0
        %277 = vmatprep.subr.mxu0 0.0
        %278 = vmatpush1.msra.mxu0 0.0
        %279 = vmatprep.subr.mxu0 0.0
        %280 = vmatpush1.msra.mxu0 0.0
        %281 = vmatprep.subr.mxu0 0.0
        %282 = vmatpush1.msra.mxu0 0.0
        %283 = vmatprep.subr.mxu0 0.0
        %284 = vmatpush1.msra.mxu0 0.0
        %285 = vmatprep.subr.mxu0 0.0
        %286 = vmatpush1.msra.mxu0 0.0
        %287 = vmatprep.subr.mxu0 0.0
        %288 = vmatpush1.msra.mxu0 0.0
        %289 = vmatprep.subr.mxu0 0.0
        %290 = vmatpush1.msra.mxu0 0.0
        %291 = vmatprep.subr.mxu0 0.0
        %292 = vmatpush1.msra.mxu0 0.0
        %293 = vmatprep.subr.mxu0 0.0
        %294 = vmatpush1.msra.mxu0 0.0
        %295 = vmatprep.subr.mxu0 0.0
        %296 = vmatpush1.msra.mxu0 0.0
        %297 = vmatprep.subr.mxu0 0.0
        %298 = vmatpush1.msra.mxu0 0.0
        %299 = vmatprep.subr.mxu0 0.0
        %300 = vmatpush1.msra.mxu0 0.0
        %301 = vmatprep.subr.mxu0 0.0
        %302 = vmatpush1.msra.mxu0 0.0
        %303 = vmatprep.subr.mxu0 0.0
        %304 = vmatpush1.msra.mxu0 0.0
        %305 = vmatprep.subr.mxu0 0.0
        %306 = vmatpush1.msra.mxu0 0.0
        %307 = vmatprep.subr.mxu0 0.0
        %308 = vmatpush1.msra.mxu0 0.0
        %309 = vmatprep.subr.mxu0 0.0
        %310 = vmatpush1.msra.mxu0 0.0
        %311 = vmatprep.subr.mxu0 0.0
        %312 = vmatpush1.msra.mxu0 0.0
        %313 = vmatprep.subr.mxu0 0.0
        %314 = vmatpush1.msra.mxu0 0.0
        %315 = vmatprep.mubr.f32.mxu0 0.0
        %316 = vmatmul.mubr.f32.gmra.mrb[0].mxu0 %v249
        %v317 = vpop.f32.mrb[0].mxu0
        %v318 = vadd.f32 0.0, %v317
        %v319 = vpop.f32.mrb[0].mxu0
        %320 = vdwg.mxu0
        %v322 = vsel %vm247, %v242, 0
        %324 = vmatprep.subr.mxu0 0.0
        %325 = vmatpush1.msra.mxu0 %v241
        %326 = vmatprep.subr.mxu0 0.0
        %327 = vmatpush1.msra.mxu0 0.0
        %328 = vmatprep.subr.mxu0 0.0
        %329 = vmatpush1.msra.mxu0 0.0
        %330 = vmatprep.subr.mxu0 0.0
        %331 = vmatpush1.msra.mxu0 0.0
        %332 = vmatprep.subr.mxu0 0.0
        %333 = vmatpush1.msra.mxu0 0.0
        %334 = vmatprep.subr.mxu0 0.0
        %335 = vmatpush1.msra.mxu0 0.0
        %336 = vmatprep.subr.mxu0 0.0
        %337 = vmatpush1.msra.mxu0 0.0
        %338 = vmatprep.subr.mxu0 0.0
        %339 = vmatpush1.msra.mxu0 0.0
        %340 = vmatprep.subr.mxu0 0.0
        %341 = vmatpush1.msra.mxu0 0.0
        %342 = vmatprep.subr.mxu0 0.0
        %343 = vmatpush1.msra.mxu0 0.0
        %344 = vmatprep.subr.mxu0 0.0
        %345 = vmatpush1.msra.mxu0 0.0
        %346 = vmatprep.subr.mxu0 0.0
        %347 = vmatpush1.msra.mxu0 0.0
        %348 = vmatprep.subr.mxu0 0.0
        %349 = vmatpush1.msra.mxu0 0.0
        %350 = vmatprep.subr.mxu0 0.0
        %351 = vmatpush1.msra.mxu0 0.0
        %352 = vmatprep.subr.mxu0 0.0
        %353 = vmatpush1.msra.mxu0 0.0
        %354 = vmatprep.subr.mxu0 0.0
        %355 = vmatpush1.msra.mxu0 0.0
        %356 = vmatprep.subr.mxu0 0.0
        %357 = vmatpush1.msra.mxu0 0.0
        %358 = vmatprep.subr.mxu0 0.0
        %359 = vmatpush1.msra.mxu0 0.0
        %360 = vmatprep.subr.mxu0 0.0
        %361 = vmatpush1.msra.mxu0 0.0
        %362 = vmatprep.subr.mxu0 0.0
        %363 = vmatpush1.msra.mxu0 0.0
        %364 = vmatprep.subr.mxu0 0.0
        %365 = vmatpush1.msra.mxu0 0.0
        %366 = vmatprep.subr.mxu0 0.0
        %367 = vmatpush1.msra.mxu0 0.0
        %368 = vmatprep.subr.mxu0 0.0
        %369 = vmatpush1.msra.mxu0 0.0
        %370 = vmatprep.subr.mxu0 0.0
        %371 = vmatpush1.msra.mxu0 0.0
        %372 = vmatprep.subr.mxu0 0.0
        %373 = vmatpush1.msra.mxu0 0.0
        %374 = vmatprep.subr.mxu0 0.0
        %375 = vmatpush1.msra.mxu0 0.0
        %376 = vmatprep.subr.mxu0 0.0
        %377 = vmatpush1.msra.mxu0 0.0
        %378 = vmatprep.subr.mxu0 0.0
        %379 = vmatpush1.msra.mxu0 0.0
        %380 = vmatprep.subr.mxu0 0.0
        %381 = vmatpush1.msra.mxu0 0.0
        %382 = vmatprep.subr.mxu0 0.0
        %383 = vmatpush1.msra.mxu0 0.0
        %384 = vmatprep.subr.mxu0 0.0
        %385 = vmatpush1.msra.mxu0 0.0
        %386 = vmatprep.subr.mxu0 0.0
        %387 = vmatpush1.msra.mxu0 0.0
        %388 = vmatprep.mubr.f32.mxu0 0.0
        %389 = vmatmul.mubr.f32.gmra.mrb[0].mxu0 %v322
        %v390 = vpop.f32.mrb[0].mxu0
        %v391 = vadd.f32 %v318, %v390
        %v392 = vpop.f32.mrb[0].mxu0
        %393 = vdwg.mxu0
        %v394 = vld [vmem:[%s207] sm:$0xff]
        %v395 = vld [vmem:[%s207 + $0x8] sm:$0xff]
        %s396 = scalar_lea.vmem %s1, 16
        %v397 = vld [vmem:[%s396] sm:$0xff]
        %400 = vrot.lane.b32.xlu0 %v394, 127
        %v401 = vpop.permute.xlu0 %400
        %402 = vrot.lane.b32.xlu0 %v395, 127
        %v403 = vpop.permute.xlu0 %402
        %vm404 = vcmask 1039360
        %v405 = vsel %vm404, %v401, %v403
        %v408 = vsel %vm247, %v397, 0
        %410 = vmatprep.subr.mxu0 0.0
        %411 = vmatpush1.msra.mxu0 %v405
        %412 = vmatprep.subr.mxu0 0.0
        %413 = vmatpush1.msra.mxu0 0.0
        %414 = vmatprep.subr.mxu0 0.0
        %415 = vmatpush1.msra.mxu0 0.0
        %416 = vmatprep.subr.mxu0 0.0
        %417 = vmatpush1.msra.mxu0 0.0
        %418 = vmatprep.subr.mxu0 0.0
        %419 = vmatpush1.msra.mxu0 0.0
        %420 = vmatprep.subr.mxu0 0.0
        %421 = vmatpush1.msra.mxu0 0.0
        %422 = vmatprep.subr.mxu0 0.0
        %423 = vmatpush1.msra.mxu0 0.0
        %424 = vmatprep.subr.mxu0 0.0
        %425 = vmatpush1.msra.mxu0 0.0
        %426 = vmatprep.subr.mxu0 0.0
        %427 = vmatpush1.msra.mxu0 0.0
        %428 = vmatprep.subr.mxu0 0.0
        %429 = vmatpush1.msra.mxu0 0.0
        %430 = vmatprep.subr.mxu0 0.0
        %431 = vmatpush1.msra.mxu0 0.0
        %432 = vmatprep.subr.mxu0 0.0
        %433 = vmatpush1.msra.mxu0 0.0
        %434 = vmatprep.subr.mxu0 0.0
        %435 = vmatpush1.msra.mxu0 0.0
        %436 = vmatprep.subr.mxu0 0.0
        %437 = vmatpush1.msra.mxu0 0.0
        %438 = vmatprep.subr.mxu0 0.0
        %439 = vmatpush1.msra.mxu0 0.0
        %440 = vmatprep.subr.mxu0 0.0
        %441 = vmatpush1.msra.mxu0 0.0
        %442 = vmatprep.subr.mxu0 0.0
        %443 = vmatpush1.msra.mxu0 0.0
        %444 = vmatprep.subr.mxu0 0.0
        %445 = vmatpush1.msra.mxu0 0.0
        %446 = vmatprep.subr.mxu0 0.0
        %447 = vmatpush1.msra.mxu0 0.0
        %448 = vmatprep.subr.mxu0 0.0
        %449 = vmatpush1.msra.mxu0 0.0
        %450 = vmatprep.subr.mxu0 0.0
        %451 = vmatpush1.msra.mxu0 0.0
        %452 = vmatprep.subr.mxu0 0.0
        %453 = vmatpush1.msra.mxu0 0.0
        %454 = vmatprep.subr.mxu0 0.0
        %455 = vmatpush1.msra.mxu0 0.0
        %456 = vmatprep.subr.mxu0 0.0
        %457 = vmatpush1.msra.mxu0 0.0
        %458 = vmatprep.subr.mxu0 0.0
        %459 = vmatpush1.msra.mxu0 0.0
        %460 = vmatprep.subr.mxu0 0.0
        %461 = vmatpush1.msra.mxu0 0.0
        %462 = vmatprep.subr.mxu0 0.0
        %463 = vmatpush1.msra.mxu0 0.0
        %464 = vmatprep.subr.mxu0 0.0
        %465 = vmatpush1.msra.mxu0 0.0
        %466 = vmatprep.subr.mxu0 0.0
        %467 = vmatpush1.msra.mxu0 0.0
        %468 = vmatprep.subr.mxu0 0.0
        %469 = vmatpush1.msra.mxu0 0.0
        %470 = vmatprep.subr.mxu0 0.0
        %471 = vmatpush1.msra.mxu0 0.0
        %472 = vmatprep.subr.mxu0 0.0
        %473 = vmatpush1.msra.mxu0 0.0
        %474 = vmatprep.mubr.f32.mxu0 0.0
        %475 = vmatmul.mubr.f32.gmra.mrb[0].mxu0 %v408
        %v476 = vpop.f32.mrb[0].mxu0
        %v477 = vadd.f32 0.0, %v476
        %v478 = vpop.f32.mrb[0].mxu0
        %479 = vdwg.mxu0
        %v480 = vadd.f32 %v391, %v477
        %s481 = scalar_lea.vmem %s207, 32 [#allocation2]
        %v482 = vld [vmem:[%s481] sm:$0xff]
        %s483 = scalar_lea.vmem %s1, 24
        %v484 = vld [vmem:[%s483] sm:$0xff]
        %v486 = vsel %vm247, %v484, 0
        %488 = vmatprep.subr.mxu0 0.0
        %489 = vmatpush1.msra.mxu0 %v482
        %490 = vmatprep.subr.mxu0 0.0
        %491 = vmatpush1.msra.mxu0 0.0
        %492 = vmatprep.subr.mxu0 0.0
        %493 = vmatpush1.msra.mxu0 0.0
        %494 = vmatprep.subr.mxu0 0.0
        %495 = vmatpush1.msra.mxu0 0.0
        %496 = vmatprep.subr.mxu0 0.0
        %497 = vmatpush1.msra.mxu0 0.0
        %498 = vmatprep.subr.mxu0 0.0
        %499 = vmatpush1.msra.mxu0 0.0
        %500 = vmatprep.subr.mxu0 0.0
        %501 = vmatpush1.msra.mxu0 0.0
        %502 = vmatprep.subr.mxu0 0.0
        %503 = vmatpush1.msra.mxu0 0.0
        %504 = vmatprep.subr.mxu0 0.0
        %505 = vmatpush1.msra.mxu0 0.0
        %506 = vmatprep.subr.mxu0 0.0
        %507 = vmatpush1.msra.mxu0 0.0
        %508 = vmatprep.subr.mxu0 0.0
        %509 = vmatpush1.msra.mxu0 0.0
        %510 = vmatprep.subr.mxu0 0.0
        %511 = vmatpush1.msra.mxu0 0.0
        %512 = vmatprep.subr.mxu0 0.0
        %513 = vmatpush1.msra.mxu0 0.0
        %514 = vmatprep.subr.mxu0 0.0
        %515 = vmatpush1.msra.mxu0 0.0
        %516 = vmatprep.subr.mxu0 0.0
        %517 = vmatpush1.msra.mxu0 0.0
        %518 = vmatprep.subr.mxu0 0.0
        %519 = vmatpush1.msra.mxu0 0.0
        %520 = vmatprep.subr.mxu0 0.0
        %521 = vmatpush1.msra.mxu0 0.0
        %522 = vmatprep.subr.mxu0 0.0
        %523 = vmatpush1.msra.mxu0 0.0
        %524 = vmatprep.subr.mxu0 0.0
        %525 = vmatpush1.msra.mxu0 0.0
        %526 = vmatprep.subr.mxu0 0.0
        %527 = vmatpush1.msra.mxu0 0.0
        %528 = vmatprep.subr.mxu0 0.0
        %529 = vmatpush1.msra.mxu0 0.0
        %530 = vmatprep.subr.mxu0 0.0
        %531 = vmatpush1.msra.mxu0 0.0
        %532 = vmatprep.subr.mxu0 0.0
        %533 = vmatpush1.msra.mxu0 0.0
        %534 = vmatprep.subr.mxu0 0.0
        %535 = vmatpush1.msra.mxu0 0.0
        %536 = vmatprep.subr.mxu0 0.0
        %537 = vmatpush1.msra.mxu0 0.0
        %538 = vmatprep.subr.mxu0 0.0
        %539 = vmatpush1.msra.mxu0 0.0
        %540 = vmatprep.subr.mxu0 0.0
        %541 = vmatpush1.msra.mxu0 0.0
        %542 = vmatprep.subr.mxu0 0.0
        %543 = vmatpush1.msra.mxu0 0.0
        %544 = vmatprep.subr.mxu0 0.0
        %545 = vmatpush1.msra.mxu0 0.0
        %546 = vmatprep.subr.mxu0 0.0
        %547 = vmatpush1.msra.mxu0 0.0
        %548 = vmatprep.subr.mxu0 0.0
        %549 = vmatpush1.msra.mxu0 0.0
        %550 = vmatprep.subr.mxu0 0.0
        %551 = vmatpush1.msra.mxu0 0.0
        %552 = vmatprep.mubr.f32.mxu0 0.0
        %553 = vmatmul.mubr.f32.gmra.mrb[0].mxu0 %v486
        %v554 = vpop.f32.mrb[0].mxu0
        %v555 = vadd.f32 0.0, %v554
        %v556 = vpop.f32.mrb[0].mxu0
        %557 = vdwg.mxu0
        %v558 = vadd.f32 %v480, %v555
        %s559 = scalar_lea.vmem %s207, 48 [#allocation2]
        %v560 = vld [vmem:[%s559] sm:$0xff]
        %s561 = scalar_lea.vmem %s1, 32
        %v562 = vld [vmem:[%s561] sm:$0xff]
        %v564 = vsel %vm247, %v562, 0
        %566 = vmatprep.subr.mxu0 0.0
        %567 = vmatpush1.msra.mxu0 %v560
        %568 = vmatprep.subr.mxu0 0.0
        %569 = vmatpush1.msra.mxu0 0.0
        %570 = vmatprep.subr.mxu0 0.0
        %571 = vmatpush1.msra.mxu0 0.0
        %572 = vmatprep.subr.mxu0 0.0
        %573 = vmatpush1.msra.mxu0 0.0
        %574 = vmatprep.subr.mxu0 0.0
        %575 = vmatpush1.msra.mxu0 0.0
        %576 = vmatprep.subr.mxu0 0.0
        %577 = vmatpush1.msra.mxu0 0.0
        %578 = vmatprep.subr.mxu0 0.0
        %579 = vmatpush1.msra.mxu0 0.0
        %580 = vmatprep.subr.mxu0 0.0
        %581 = vmatpush1.msra.mxu0 0.0
        %582 = vmatprep.subr.mxu0 0.0
        %583 = vmatpush1.msra.mxu0 0.0
        %584 = vmatprep.subr.mxu0 0.0
        %585 = vmatpush1.msra.mxu0 0.0
        %586 = vmatprep.subr.mxu0 0.0
        %587 = vmatpush1.msra.mxu0 0.0
        %588 = vmatprep.subr.mxu0 0.0
        %589 = vmatpush1.msra.mxu0 0.0
        %590 = vmatprep.subr.mxu0 0.0
        %591 = vmatpush1.msra.mxu0 0.0
        %592 = vmatprep.subr.mxu0 0.0
        %593 = vmatpush1.msra.mxu0 0.0
        %594 = vmatprep.subr.mxu0 0.0
        %595 = vmatpush1.msra.mxu0 0.0
        %596 = vmatprep.subr.mxu0 0.0
        %597 = vmatpush1.msra.mxu0 0.0
        %598 = vmatprep.subr.mxu0 0.0
        %599 = vmatpush1.msra.mxu0 0.0
        %600 = vmatprep.subr.mxu0 0.0
        %601 = vmatpush1.msra.mxu0 0.0
        %602 = vmatprep.subr.mxu0 0.0
        %603 = vmatpush1.msra.mxu0 0.0
        %604 = vmatprep.subr.mxu0 0.0
        %605 = vmatpush1.msra.mxu0 0.0
        %606 = vmatprep.subr.mxu0 0.0
        %607 = vmatpush1.msra.mxu0 0.0
        %608 = vmatprep.subr.mxu0 0.0
        %609 = vmatpush1.msra.mxu0 0.0
        %610 = vmatprep.subr.mxu0 0.0
        %611 = vmatpush1.msra.mxu0 0.0
        %612 = vmatprep.subr.mxu0 0.0
        %613 = vmatpush1.msra.mxu0 0.0
        %614 = vmatprep.subr.mxu0 0.0
        %615 = vmatpush1.msra.mxu0 0.0
        %616 = vmatprep.subr.mxu0 0.0
        %617 = vmatpush1.msra.mxu0 0.0
        %618 = vmatprep.subr.mxu0 0.0
        %619 = vmatpush1.msra.mxu0 0.0
        %620 = vmatprep.subr.mxu0 0.0
        %621 = vmatpush1.msra.mxu0 0.0
        %622 = vmatprep.subr.mxu0 0.0
        %623 = vmatpush1.msra.mxu0 0.0
        %624 = vmatprep.subr.mxu0 0.0
        %625 = vmatpush1.msra.mxu0 0.0
        %626 = vmatprep.subr.mxu0 0.0
        %627 = vmatpush1.msra.mxu0 0.0
        %628 = vmatprep.subr.mxu0 0.0
        %629 = vmatpush1.msra.mxu0 0.0
        %630 = vmatprep.mubr.f32.mxu0 0.0
        %631 = vmatmul.mubr.f32.gmra.mrb[0].mxu0 %v564
        %v632 = vpop.f32.mrb[0].mxu0
        %v633 = vadd.f32 0.0, %v632
        %v634 = vpop.f32.mrb[0].mxu0
        %635 = vdwg.mxu0
        %v636 = vadd.f32 %v558, %v633
        %v637 = vld [vmem:[%s481] sm:$0xff]
        %v638 = vld [vmem:[%s481 + $0x8] sm:$0xff]
        %s639 = scalar_lea.vmem %s1, 40
        %v640 = vld [vmem:[%s639] sm:$0xff]
        %643 = vrot.lane.b32.xlu0 %v637, 127
        %v644 = vpop.permute.xlu0 %643
        %645 = vrot.lane.b32.xlu0 %v638, 127
        %v646 = vpop.permute.xlu0 %645
        %v647 = vsel %vm404, %v644, %v646
        %v650 = vsel %vm247, %v640, 0
        %652 = vmatprep.subr.mxu0 0.0
        %653 = vmatpush1.msra.mxu0 %v647
        %654 = vmatprep.subr.mxu0 0.0
        %655 = vmatpush1.msra.mxu0 0.0
        %656 = vmatprep.subr.mxu0 0.0
        %657 = vmatpush1.msra.mxu0 0.0
        %658 = vmatprep.subr.mxu0 0.0
        %659 = vmatpush1.msra.mxu0 0.0
        %660 = vmatprep.subr.mxu0 0.0
        %661 = vmatpush1.msra.mxu0 0.0
        %662 = vmatprep.subr.mxu0 0.0
        %663 = vmatpush1.msra.mxu0 0.0
        %664 = vmatprep.subr.mxu0 0.0
        %665 = vmatpush1.msra.mxu0 0.0
        %666 = vmatprep.subr.mxu0 0.0
        %667 = vmatpush1.msra.mxu0 0.0
        %668 = vmatprep.subr.mxu0 0.0
        %669 = vmatpush1.msra.mxu0 0.0
        %670 = vmatprep.subr.mxu0 0.0
        %671 = vmatpush1.msra.mxu0 0.0
        %672 = vmatprep.subr.mxu0 0.0
        %673 = vmatpush1.msra.mxu0 0.0
        %674 = vmatprep.subr.mxu0 0.0
        %675 = vmatpush1.msra.mxu0 0.0
        %676 = vmatprep.subr.mxu0 0.0
        %677 = vmatpush1.msra.mxu0 0.0
        %678 = vmatprep.subr.mxu0 0.0
        %679 = vmatpush1.msra.mxu0 0.0
        %680 = vmatprep.subr.mxu0 0.0
        %681 = vmatpush1.msra.mxu0 0.0
        %682 = vmatprep.subr.mxu0 0.0
        %683 = vmatpush1.msra.mxu0 0.0
        %684 = vmatprep.subr.mxu0 0.0
        %685 = vmatpush1.msra.mxu0 0.0
        %686 = vmatprep.subr.mxu0 0.0
        %687 = vmatpush1.msra.mxu0 0.0
        %688 = vmatprep.subr.mxu0 0.0
        %689 = vmatpush1.msra.mxu0 0.0
        %690 = vmatprep.subr.mxu0 0.0
        %691 = vmatpush1.msra.mxu0 0.0
        %692 = vmatprep.subr.mxu0 0.0
        %693 = vmatpush1.msra.mxu0 0.0
        %694 = vmatprep.subr.mxu0 0.0
        %695 = vmatpush1.msra.mxu0 0.0
        %696 = vmatprep.subr.mxu0 0.0
        %697 = vmatpush1.msra.mxu0 0.0
        %698 = vmatprep.subr.mxu0 0.0
        %699 = vmatpush1.msra.mxu0 0.0
        %700 = vmatprep.subr.mxu0 0.0
        %701 = vmatpush1.msra.mxu0 0.0
        %702 = vmatprep.subr.mxu0 0.0
        %703 = vmatpush1.msra.mxu0 0.0
        %704 = vmatprep.subr.mxu0 0.0
        %705 = vmatpush1.msra.mxu0 0.0
        %706 = vmatprep.subr.mxu0 0.0
        %707 = vmatpush1.msra.mxu0 0.0
        %708 = vmatprep.subr.mxu0 0.0
        %709 = vmatpush1.msra.mxu0 0.0
        %710 = vmatprep.subr.mxu0 0.0
        %711 = vmatpush1.msra.mxu0 0.0
        %712 = vmatprep.subr.mxu0 0.0
        %713 = vmatpush1.msra.mxu0 0.0
        %714 = vmatprep.subr.mxu0 0.0
        %715 = vmatpush1.msra.mxu0 0.0
        %716 = vmatprep.mubr.f32.mxu0 0.0
        %717 = vmatmul.mubr.f32.gmra.mrb[0].mxu0 %v650
        %v718 = vpop.f32.mrb[0].mxu0
        %v719 = vadd.f32 0.0, %v718
        %v720 = vpop.f32.mrb[0].mxu0
        %721 = vdwg.mxu0
        %v722 = vadd.f32 %v636, %v719
        %s723 = scalar_lea.vmem %s1, 48
        %v724 = vld [vmem:[%s723] sm:$0xff]
        %725 = vrot.lane.b32.xlu0 %v394, 119
        %v726 = vpop.permute.xlu0 %725
        %727 = vrot.lane.b32.xlu0 %v395, 119
        %v728 = vpop.permute.xlu0 %727
        %vm729 = vcmask 973824
        %v730 = vsel %vm729, %v726, %v728
        %v733 = vsel %vm247, %v724, 0
        %735 = vmatprep.subr.mxu0 0.0
        %736 = vmatpush1.msra.mxu0 %v730
        %737 = vmatprep.subr.mxu0 0.0
        %738 = vmatpush1.msra.mxu0 0.0
        %739 = vmatprep.subr.mxu0 0.0
        %740 = vmatpush1.msra.mxu0 0.0
        %741 = vmatprep.subr.mxu0 0.0
        %742 = vmatpush1.msra.mxu0 0.0
        %743 = vmatprep.subr.mxu0 0.0
        %744 = vmatpush1.msra.mxu0 0.0
        %745 = vmatprep.subr.mxu0 0.0
        %746 = vmatpush1.msra.mxu0 0.0
        %747 = vmatprep.subr.mxu0 0.0
        %748 = vmatpush1.msra.mxu0 0.0
        %749 = vmatprep.subr.mxu0 0.0
        %750 = vmatpush1.msra.mxu0 0.0
        %751 = vmatprep.subr.mxu0 0.0
        %752 = vmatpush1.msra.mxu0 0.0
        %753 = vmatprep.subr.mxu0 0.0
        %754 = vmatpush1.msra.mxu0 0.0
        %755 = vmatprep.subr.mxu0 0.0
        %756 = vmatpush1.msra.mxu0 0.0
        %757 = vmatprep.subr.mxu0 0.0
        %758 = vmatpush1.msra.mxu0 0.0
        %759 = vmatprep.subr.mxu0 0.0
        %760 = vmatpush1.msra.mxu0 0.0
        %761 = vmatprep.subr.mxu0 0.0
        %762 = vmatpush1.msra.mxu0 0.0
        %763 = vmatprep.subr.mxu0 0.0
        %764 = vmatpush1.msra.mxu0 0.0
        %765 = vmatprep.subr.mxu0 0.0
        %766 = vmatpush1.msra.mxu0 0.0
        %767 = vmatprep.subr.mxu0 0.0
        %768 = vmatpush1.msra.mxu0 0.0
        %769 = vmatprep.subr.mxu0 0.0
        %770 = vmatpush1.msra.mxu0 0.0
        %771 = vmatprep.subr.mxu0 0.0
        %772 = vmatpush1.msra.mxu0 0.0
        %773 = vmatprep.subr.mxu0 0.0
        %774 = vmatpush1.msra.mxu0 0.0
        %775 = vmatprep.subr.mxu0 0.0
        %776 = vmatpush1.msra.mxu0 0.0
        %777 = vmatprep.subr.mxu0 0.0
        %778 = vmatpush1.msra.mxu0 0.0
        %779 = vmatprep.subr.mxu0 0.0
        %780 = vmatpush1.msra.mxu0 0.0
        %781 = vmatprep.subr.mxu0 0.0
        %782 = vmatpush1.msra.mxu0 0.0
        %783 = vmatprep.subr.mxu0 0.0
        %784 = vmatpush1.msra.mxu0 0.0
        %785 = vmatprep.subr.mxu0 0.0
        %786 = vmatpush1.msra.mxu0 0.0
        %787 = vmatprep.subr.mxu0 0.0
        %788 = vmatpush1.msra.mxu0 0.0
        %789 = vmatprep.subr.mxu0 0.0
        %790 = vmatpush1.msra.mxu0 0.0
        %791 = vmatprep.subr.mxu0 0.0
        %792 = vmatpush1.msra.mxu0 0.0
        %793 = vmatprep.subr.mxu0 0.0
        %794 = vmatpush1.msra.mxu0 0.0
        %795 = vmatprep.subr.mxu0 0.0
        %796 = vmatpush1.msra.mxu0 0.0
        %797 = vmatprep.subr.mxu0 0.0
        %798 = vmatpush1.msra.mxu0 0.0
        %799 = vmatprep.mubr.f32.mxu0 0.0
        %800 = vmatmul.mubr.f32.gmra.mrb[0].mxu0 %v733
        %v801 = vpop.f32.mrb[0].mxu0
        %v802 = vadd.f32 0.0, %v801
        %v803 = vpop.f32.mrb[0].mxu0
        %804 = vdwg.mxu0
        %v805 = vadd.f32 %v722, %v802
        %v806 = vld [vmem:[%s243] sm:$0xff]
        %v807 = vld [vmem:[%s243 + $0x8] sm:$0xff]
        %s808 = scalar_lea.vmem %s1, 56
        %v809 = vld [vmem:[%s808] sm:$0xff]
        %812 = vrot.lane.b32.xlu0 %v806, 119
        %v813 = vpop.permute.xlu0 %812
        %814 = vrot.lane.b32.xlu0 %v807, 119
        %v815 = vpop.permute.xlu0 %814
        %v816 = vsel %vm729, %v813, %v815
        %v819 = vsel %vm247, %v809, 0
        %821 = vmatprep.subr.mxu0 0.0
        %822 = vmatpush1.msra.mxu0 %v816
        %823 = vmatprep.subr.mxu0 0.0
        %824 = vmatpush1.msra.mxu0 0.0
        %825 = vmatprep.subr.mxu0 0.0
        %826 = vmatpush1.msra.mxu0 0.0
        %827 = vmatprep.subr.mxu0 0.0
        %828 = vmatpush1.msra.mxu0 0.0
        %829 = vmatprep.subr.mxu0 0.0
        %830 = vmatpush1.msra.mxu0 0.0
        %831 = vmatprep.subr.mxu0 0.0
        %832 = vmatpush1.msra.mxu0 0.0
        %833 = vmatprep.subr.mxu0 0.0
        %834 = vmatpush1.msra.mxu0 0.0
        %835 = vmatprep.subr.mxu0 0.0
        %836 = vmatpush1.msra.mxu0 0.0
        %837 = vmatprep.subr.mxu0 0.0
        %838 = vmatpush1.msra.mxu0 0.0
        %839 = vmatprep.subr.mxu0 0.0
        %840 = vmatpush1.msra.mxu0 0.0
        %841 = vmatprep.subr.mxu0 0.0
        %842 = vmatpush1.msra.mxu0 0.0
        %843 = vmatprep.subr.mxu0 0.0
        %844 = vmatpush1.msra.mxu0 0.0
        %845 = vmatprep.subr.mxu0 0.0
        %846 = vmatpush1.msra.mxu0 0.0
        %847 = vmatprep.subr.mxu0 0.0
        %848 = vmatpush1.msra.mxu0 0.0
        %849 = vmatprep.subr.mxu0 0.0
        %850 = vmatpush1.msra.mxu0 0.0
        %851 = vmatprep.subr.mxu0 0.0
        %852 = vmatpush1.msra.mxu0 0.0
        %853 = vmatprep.subr.mxu0 0.0
        %854 = vmatpush1.msra.mxu0 0.0
        %855 = vmatprep.subr.mxu0 0.0
        %856 = vmatpush1.msra.mxu0 0.0
        %857 = vmatprep.subr.mxu0 0.0
        %858 = vmatpush1.msra.mxu0 0.0
        %859 = vmatprep.subr.mxu0 0.0
        %860 = vmatpush1.msra.mxu0 0.0
        %861 = vmatprep.subr.mxu0 0.0
        %862 = vmatpush1.msra.mxu0 0.0
        %863 = vmatprep.subr.mxu0 0.0
        %864 = vmatpush1.msra.mxu0 0.0
        %865 = vmatprep.subr.mxu0 0.0
        %866 = vmatpush1.msra.mxu0 0.0
        %867 = vmatprep.subr.mxu0 0.0
        %868 = vmatpush1.msra.mxu0 0.0
        %869 = vmatprep.subr.mxu0 0.0
        %870 = vmatpush1.msra.mxu0 0.0
        %871 = vmatprep.subr.mxu0 0.0
        %872 = vmatpush1.msra.mxu0 0.0
        %873 = vmatprep.subr.mxu0 0.0
        %874 = vmatpush1.msra.mxu0 0.0
        %875 = vmatprep.subr.mxu0 0.0
        %876 = vmatpush1.msra.mxu0 0.0
        %877 = vmatprep.subr.mxu0 0.0
        %878 = vmatpush1.msra.mxu0 0.0
        %879 = vmatprep.subr.mxu0 0.0
        %880 = vmatpush1.msra.mxu0 0.0
        %881 = vmatprep.subr.mxu0 0.0
        %882 = vmatpush1.msra.mxu0 0.0
        %883 = vmatprep.subr.mxu0 0.0
        %884 = vmatpush1.msra.mxu0 0.0
        %885 = vmatprep.mubr.f32.mxu0 0.0
        %886 = vmatmul.mubr.f32.gmra.mrb[0].mxu0 %v819
        %v887 = vpop.f32.mrb[0].mxu0
        %v888 = vadd.f32 0.0, %v887
        %v889 = vpop.f32.mrb[0].mxu0
        %890 = vdwg.mxu0
        %v891 = vadd.f32 %v805, %v888
        %s892 = scalar_lea.vmem %s1, 64
        %v893 = vld [vmem:[%s892] sm:$0xff]
        %894 = vrot.lane.b32.xlu0 %v394, 118
        %v895 = vpop.permute.xlu0 %894
        %896 = vrot.lane.b32.xlu0 %v395, 118
        %v897 = vpop.permute.xlu0 %896
        %vm898 = vcmask 965632
        %v899 = vsel %vm898, %v895, %v897
        %v902 = vsel %vm247, %v893, 0
        %904 = vmatprep.subr.mxu0 0.0
        %905 = vmatpush1.msra.mxu0 %v899
        %906 = vmatprep.subr.mxu0 0.0
        %907 = vmatpush1.msra.mxu0 0.0
        %908 = vmatprep.subr.mxu0 0.0
        %909 = vmatpush1.msra.mxu0 0.0
        %910 = vmatprep.subr.mxu0 0.0
        %911 = vmatpush1.msra.mxu0 0.0
        %912 = vmatprep.subr.mxu0 0.0
        %913 = vmatpush1.msra.mxu0 0.0
        %914 = vmatprep.subr.mxu0 0.0
        %915 = vmatpush1.msra.mxu0 0.0
        %916 = vmatprep.subr.mxu0 0.0
        %917 = vmatpush1.msra.mxu0 0.0
        %918 = vmatprep.subr.mxu0 0.0
        %919 = vmatpush1.msra.mxu0 0.0
        %920 = vmatprep.subr.mxu0 0.0
        %921 = vmatpush1.msra.mxu0 0.0
        %922 = vmatprep.subr.mxu0 0.0
        %923 = vmatpush1.msra.mxu0 0.0
        %924 = vmatprep.subr.mxu0 0.0
        %925 = vmatpush1.msra.mxu0 0.0
        %926 = vmatprep.subr.mxu0 0.0
        %927 = vmatpush1.msra.mxu0 0.0
        %928 = vmatprep.subr.mxu0 0.0
        %929 = vmatpush1.msra.mxu0 0.0
        %930 = vmatprep.subr.mxu0 0.0
        %931 = vmatpush1.msra.mxu0 0.0
        %932 = vmatprep.subr.mxu0 0.0
        %933 = vmatpush1.msra.mxu0 0.0
        %934 = vmatprep.subr.mxu0 0.0
        %935 = vmatpush1.msra.mxu0 0.0
        %936 = vmatprep.subr.mxu0 0.0
        %937 = vmatpush1.msra.mxu0 0.0
        %938 = vmatprep.subr.mxu0 0.0
        %939 = vmatpush1.msra.mxu0 0.0
        %940 = vmatprep.subr.mxu0 0.0
        %941 = vmatpush1.msra.mxu0 0.0
        %942 = vmatprep.subr.mxu0 0.0
        %943 = vmatpush1.msra.mxu0 0.0
        %944 = vmatprep.subr.mxu0 0.0
        %945 = vmatpush1.msra.mxu0 0.0
        %946 = vmatprep.subr.mxu0 0.0
        %947 = vmatpush1.msra.mxu0 0.0
        %948 = vmatprep.subr.mxu0 0.0
        %949 = vmatpush1.msra.mxu0 0.0
        %950 = vmatprep.subr.mxu0 0.0
        %951 = vmatpush1.msra.mxu0 0.0
        %952 = vmatprep.subr.mxu0 0.0
        %953 = vmatpush1.msra.mxu0 0.0
        %954 = vmatprep.subr.mxu0 0.0
        %955 = vmatpush1.msra.mxu0 0.0
        %956 = vmatprep.subr.mxu0 0.0
        %957 = vmatpush1.msra.mxu0 0.0
        %958 = vmatprep.subr.mxu0 0.0
        %959 = vmatpush1.msra.mxu0 0.0
        %960 = vmatprep.subr.mxu0 0.0
        %961 = vmatpush1.msra.mxu0 0.0
        %962 = vmatprep.subr.mxu0 0.0
        %963 = vmatpush1.msra.mxu0 0.0
        %964 = vmatprep.subr.mxu0 0.0
        %965 = vmatpush1.msra.mxu0 0.0
        %966 = vmatprep.subr.mxu0 0.0
        %967 = vmatpush1.msra.mxu0 0.0
        %968 = vmatprep.mubr.f32.mxu0 0.0
        %969 = vmatmul.mubr.f32.gmra.mrb[0].mxu0 %v902
        %v970 = vpop.f32.mrb[0].mxu0
        %v971 = vadd.f32 0.0, %v970
        %v972 = vpop.f32.mrb[0].mxu0
        %973 = vdwg.mxu0
        %v974 = vadd.f32 %v891, %v971
        %975 = vst [vmem:[%s236] sm:$0xff] %v974
        %v976 = vld [vmem:[%s2] sm:$0x1]
        %v978 = vlaneseq
        %v979 = vshrl.u32 %v978, 7
        %v980 = vsub.s32 0, %v979
        %v981 = vrot.slane %v976, %v980
        %v983 = vmul.f32 %v974, %v981
        %984 = vadd.xlane.f32.xlu0 %v983
        %v985 = vpop.xlane.xlu0 %984
        %v986 = vmul.f32 %v983, %v983
        %987 = vadd.xlane.f32.xlu0 %v986
        %v988 = vpop.xlane.xlu0 %987
        %vm989 = vcmask 7168
        %v990 = vsel %vm989, %v985, %v988
        %vm991 = vcmask 15360
        %992 = vst.msk [vmem:[%s240] sm:$0xff] %vm991, %v990
        %p993 = scmp.lt.s32.totalorder %s16, 1
        %s994 = scalar_select %p993, %s16, 1
        %s995 = smul.addr %s994, 8
        %s996 = scalar_lea.vmem %s3, %s995
        %p997 = scmp.lt.s32.totalorder %s16, 1
        %s998 = scalar_select %p997, %s16, 1
        %s999 = smul.addr %s998, 8
        %s1000 = scalar_lea.vmem %s4, %s999
        // Predicated region
        $region56: #{conv_pool_forward.2} parent=50 // pred_check
          %p1001 = pneg %p102
        $region57: #{conv_pool_forward.2} parent=50 // pred_check_branch
          %1003 = sbr.rel (%p1001) target = $region59
        $region58: #{conv_pool_forward.2} parent=50 // pred_region
          _
        $region59: #{conv_pool_forward.2} parent=50 // pred_fallthru
          _
        // Predicated region
        $region60: #{conv_pool_forward.2} parent=50 // pred_check
          %p1004 = pneg %p128
        $region61: #{conv_pool_forward.2} parent=50 // pred_check_branch
          %1006 = sbr.rel (%p1004) target = $region63
        $region62: #{conv_pool_forward.2} parent=50 // pred_region
          _
        $region63: #{conv_pool_forward.2} parent=50 // pred_fallthru
          _
      $region51: #{conv_pool_forward.2} parent=5 // pred_fallthru
        _
      %p1007 = scmp.le.s32.totalorder 2, %s11
      // Predicated region
      $region64: #{conv_pool_forward.2} parent=5 // pred_check
        %p1008 = pneg %p1007
      $region65: #{conv_pool_forward.2} parent=5 // pred_check_branch
        %1010 = sbr.rel (%p1008) target = $region67
      $region66: #{conv_pool_forward.2} parent=5 // pred_region
        %s1011 = ssub.s32 %s11, 2
        // Predicated region
        $region68: #{conv_pool_forward.2} parent=66 // pred_check
          %p1012 = pneg %p108
        $region69: #{conv_pool_forward.2} parent=66 // pred_check_branch
          %1014 = sbr.rel (%p1012) target = $region71
        $region70: #{conv_pool_forward.2} parent=66 // pred_region
          %p1015 = scmp.lt.s32.totalorder %s17, 1
          %s1016 = scalar_select %p1015, %s17, 1
          %s1017 = smul.addr %s1016, 8
          %s1018 = scalar_lea.vmem %s3, %s1017
        $region71: #{conv_pool_forward.2} parent=66 // pred_fallthru
          _
        // Predicated region
        $region72: #{conv_pool_forward.2} parent=66 // pred_check
          %p1019 = pneg %p134
        $region73: #{conv_pool_forward.2} parent=66 // pred_check_branch
          %1021 = sbr.rel (%p1019) target = $region75
        $region74: #{conv_pool_forward.2} parent=66 // pred_region
          %p1022 = scmp.lt.s32.totalorder %s17, 1
          %s1023 = scalar_select %p1022, %s17, 1
          %s1024 = smul.addr %s1023, 8
          %s1025 = scalar_lea.vmem %s4, %s1024
        $region75: #{conv_pool_forward.2} parent=66 // pred_fallthru
          _
      $region67: #{conv_pool_forward.2} parent=5 // pred_fallthru
        _
    $region6: #{conv_pool_forward.2} parent=1 // loop_footer
      %s15 = sadd.s32 1, %s11
    $region7: #{conv_pool_forward.2} parent=1 // loop_footer_branch
      %10 = sbr.rel target = $region3
    $region8: #{conv_pool_forward.2} parent=1 // loop_exit
      _

</llo_original>
